<compile_context>
chip_gen: v7x
topology: tpu7x:2x2x1
jax: 0.10.0
libtpu: 0.0.40
codegen_flags: <defaults>
</compile_context>

<pallas_src>
import jax
import jax.numpy as jnp
from jax import lax
from jax.experimental import pallas as pl
from jax.experimental.pallas import tpu as pltpu

EPS = 1e-5  # nn.InstanceNorm2d default eps (affine=False, biased variance)


def _tensorcores_per_chip():
    """2 on v7x (dual TensorCore), 1 on v5e/v6e/unknown."""
    try:
        kind = (jax.devices()[0].device_kind or "").lower()
    except Exception:
        return 1
    return 2 if ("v7" in kind or "7x" in kind) else 1


def _pick_batch_tile(n, c_in, c_inter, c_out, hw, tc_per_chip,
                     vmem_budget_bytes=12 * 1024 * 1024):
    """Largest divisor of n that fits the VMEM budget; on dual-TC chips keep >= 2 grid steps."""
    # Dominant per-image f32 footprint: fused-K window (9*c_inter*hw), staged xr, double-buffered
    # in/out blocks, and a few (c_inter, hw)-sized intermediates.  Generous estimate.
    per_image = 4 * hw * (9 * c_inter + 4 * c_inter + 5 * c_in + 3 * c_out)
    cap = max(1, vmem_budget_bytes // per_image)
    divisors = [t for t in range(1, n + 1) if n % t == 0 and t <= cap]
    if tc_per_chip >= 2:
        par = [t for t in divisors if n // t >= tc_per_chip]
        if par:
            return max(par)
    return max(divisors)


def _make_kernel(b_tile, c_in, c_inter, c_out, h, w):
    hw = h * w
    L = b_tile * hw
    # Tap order k = (dy+1)*3 + (dx+1); flattened spatial shift s = dy*W + dx.
    shifts = [dy * w + dx for dy in (-1, 0, 1) for dx in (-1, 0, 1)]
    inv_hw = 1.0 / float(hw)

    def kernel(x_ref, w1_ref, w2_ref, mask_ref, seg_ref, o_ref, xw_ref, win_ref):
        # x_ref:   (b_tile, c_in, hw)        images, HW lane-dense
        # w1_ref:  (c_inter, c_in)           1x1 conv weights
        # w2_ref:  (c_out, 9*c_inter)        3x3 conv weights, tap-major fused K
        # mask_ref:(9, L)                    per-tap border masks, tiled across b_tile images
        # seg_ref: (b_tile, L)               0/1 image-segment indicator (lane p -> image p//hw)
        # o_ref:   (b_tile, c_in+c_out, hw)  fused [x, conv_out] channel concat
        # xw_ref:  (c_in, L)                 VMEM scratch: lane-concatenated relu(norm(x))
        # win_ref: (9*c_inter, L)            VMEM scratch: fused-K 3x3 window
        x3 = x_ref[...]
        w1 = w1_ref[...]
        w2 = w2_ref[...]
        masks = mask_ref[...]                                     # (9, L)

        # ---- InstanceNorm(x) + ReLU, single pass (sum & sumsq together) ----
        mu = jnp.sum(x3, axis=-1, keepdims=True) * inv_hw         # (b_tile, c_in, 1)
        ex2 = jnp.sum(x3 * x3, axis=-1, keepdims=True) * inv_hw
        inv = lax.rsqrt(ex2 - mu * mu + EPS)                      # rsqrt -> EUP
        xr3 = jnp.maximum((x3 - mu) * inv, 0.0)                   # (b_tile, c_in, hw)

        # ---- lane-concatenate images into the wide staging scratch ----
        for b in range(b_tile):                                   # tiny aligned VMEM copies
            xw_ref[:, b * hw:(b + 1) * hw] = xr3[b]

        # ---- conv1 (1x1): ONE wide matmul over all b_tile images ----
        hwide = jnp.dot(w1, xw_ref[...],
                        preferred_element_type=jnp.float32)       # (c_inter, L)

        # ---- InstanceNorm(h) + ReLU on the wide layout ----
        if b_tile == 1:
            hmu = jnp.sum(hwide, axis=-1, keepdims=True) * inv_hw
            hex2 = jnp.sum(hwide * hwide, axis=-1, keepdims=True) * inv_hw
            hinv = lax.rsqrt(hex2 - hmu * hmu + EPS)
            hn = jnp.maximum((hwide - hmu) * hinv, 0.0)           # (c_inter, L)
        else:
            seg = seg_ref[...]                                    # (b_tile, L)
            # Segmented per-image sums via the MXU (contract the lane axis with seg^T).
            dn = (((1,), (1,)), ((), ()))
            hmu = lax.dot_general(hwide, seg, dn,
                                  preferred_element_type=jnp.float32) * inv_hw   # (c_inter, b_tile)
            hex2 = lax.dot_general(hwide * hwide, seg, dn,
                                   preferred_element_type=jnp.float32) * inv_hw
            hinv = lax.rsqrt(hex2 - hmu * hmu + EPS)              # (c_inter, b_tile)
            # Broadcast the per-(channel,image) affine back to the wide layout (K = b_tile).
            scale_w = jnp.dot(hinv, seg, preferred_element_type=jnp.float32)      # (c_inter, L)
            shift_w = jnp.dot(hmu * hinv, seg, preferred_element_type=jnp.float32)
            hn = jnp.maximum(hwide * scale_w - shift_w, 0.0)      # (c_inter, L)

        # ---- conv2 (3x3, pad 1) as ONE K=9*c_inter matmul over all images ----
        # Each tap slab is written straight into the persistent window scratch.  Rolling the
        # wide buffer across image boundaries is safe: every wrapped / cross-image element
        # lands on a masked-out border position.
        for k, s_k in enumerate(shifts):
            rolled = hn if s_k == 0 else pltpu.roll(hn, (-s_k) % L, 1)   # XLU lane roll
            win_ref[k * c_inter:(k + 1) * c_inter, :] = rolled * masks[k:k + 1]
        y = jnp.dot(w2, win_ref[...],
                    preferred_element_type=jnp.float32)           # (c_out, L)

        # ---- fused channel concat: one aligned full-tile store per image ----
        for b in range(b_tile):
            o_ref[b] = jnp.concatenate([x3[b], y[:, b * hw:(b + 1) * hw]], axis=0)

    return kernel


def bottleneck_block(x_nchw, conv1_w, conv2_w, b_tile=None):
    """x_nchw: (N, C_in, H, W); conv1_w: (C_inter, C_in, 1, 1); conv2_w: (C_out, C_inter, 3, 3)."""
    n, c_in, h, w = x_nchw.shape
    c_inter = conv1_w.shape[0]
    c_out = conv2_w.shape[0]
    hw = h * w
    if b_tile is None:
        b_tile = _pick_batch_tile(n, c_in, c_inter, c_out, hw, _tensorcores_per_chip())
    L = b_tile * hw

    # Flattened NCHW layout: free metadata reshapes, no wrapper transposes.
    x_flat = x_nchw.reshape(n, c_in, hw).astype(jnp.float32)                 # (N, C_in, HW)
    w1 = conv1_w[:, :, 0, 0].astype(jnp.float32)                             # (C_inter, C_in)
    w2f = jnp.transpose(conv2_w, (0, 2, 3, 1)).reshape(c_out, 9 * c_inter)   # (C_out, 9*C_inter)
    w2f = w2f.astype(jnp.float32)

    # Per-tap border-validity masks (9, HW), tiled across the b_tile images on the lane axis.
    ys, xs = jnp.meshgrid(jnp.arange(h), jnp.arange(w), indexing="ij")
    rows = []
    for dy in (-1, 0, 1):
        for dx in (-1, 0, 1):
            m = (ys + dy >= 0) & (ys + dy < h) & (xs + dx >= 0) & (xs + dx < w)
            rows.append(m.reshape(hw))
    masks = jnp.tile(jnp.stack(rows, axis=0).astype(jnp.float32), (1, b_tile))   # (9, L)

    # 0/1 image-segment indicator: seg[b, p] = 1 iff lane p belongs to image b.
    seg = (jnp.arange(L)[None, :] // hw == jnp.arange(b_tile)[:, None]).astype(jnp.float32)

    kernel = _make_kernel(b_tile, c_in, c_inter, c_out, h, w)

    out_flat = pl.pallas_call(
        kernel,
        out_shape=jax.ShapeDtypeStruct((n, c_in + c_out, hw), jnp.float32),
        grid_spec=pltpu.PrefetchScalarGridSpec(
            num_scalar_prefetch=0,
            grid=(n // b_tile,),
            in_specs=[
                pl.BlockSpec((b_tile, c_in, hw), lambda i: (i, 0, 0)),
                pl.BlockSpec((c_inter, c_in), lambda i: (0, 0)),
                pl.BlockSpec((c_out, 9 * c_inter), lambda i: (0, 0)),
                pl.BlockSpec((9, L), lambda i: (0, 0)),
                pl.BlockSpec((b_tile, L), lambda i: (0, 0)),
            ],
            out_specs=pl.BlockSpec((b_tile, c_in + c_out, hw), lambda i: (i, 0, 0)),
            scratch_shapes=[
                pltpu.VMEM((c_in, L), jnp.float32),          # staged relu(norm(x)), lane-concat
                pltpu.VMEM((9 * c_inter, L), jnp.float32),   # fused-K 3x3 window
            ],
        ),
        compiler_params=pltpu.CompilerParams(dimension_semantics=("parallel",)),
    )(x_flat, w1, w2f, masks, seg)

    return out_flat.reshape(n, c_in + c_out, h, w)


def _reference(x_nchw, conv1_w, conv2_w):
    """Pure-JAX/XLA reference of the PyTorch forward (for sanity checking)."""
    def inorm(v):
        mu = jnp.mean(v, axis=(2, 3), keepdims=True)
        var = jnp.mean((v - mu) ** 2, axis=(2, 3), keepdims=True)
        return (v - mu) / jnp.sqrt(var + EPS)

    hh = jax.nn.relu(inorm(x_nchw))
    hh = lax.conv_general_dilated(hh, conv1_w, (1, 1), "VALID",
                                  dimension_numbers=("NCHW", "OIHW", "NCHW"))
    hh = jax.nn.relu(inorm(hh))
    hh = lax.conv_general_dilated(hh, conv2_w, (1, 1), ((1, 1), (1, 1)),
                                  dimension_numbers=("NCHW", "OIHW", "NCHW"))
    return jnp.concatenate([x_nchw, hh], axis=1)


if __name__ == "__main__":
    # Small shapes consistent with the module: N=2, in_planes=4, out_planes=4, H=W=16.
    N, in_planes, out_planes, H, W = 2, 4, 4, 16, 16
    inter_planes = out_planes * 4

    key = jax.random.PRNGKey(0)
    kx, k1, k2 = jax.random.split(key, 3)
    x = jax.random.normal(kx, (N, in_planes, H, W), dtype=jnp.float32)
    conv1_w = jax.random.normal(k1, (inter_planes, in_planes, 1, 1), jnp.float32) * (2.0 / in_planes) ** 0.5
    conv2_w = jax.random.normal(k2, (out_planes, inter_planes, 3, 3), jnp.float32) * (2.0 / (9 * inter_planes)) ** 0.5

    out = jax.block_until_ready(bottleneck_block(x, conv1_w, conv2_w))
    ref = jax.block_until_ready(_reference(x, conv1_w, conv2_w))

    assert out.shape == (N, in_planes + out_planes, H, W), out.shape
    assert jnp.allclose(out, ref, rtol=1e-4, atol=1e-4), float(jnp.max(jnp.abs(out - ref)))

    print("KERNEL_OK")
</pallas_src>

<mosaic_0001>
module attributes {stable_mosaic.version = 11 : i64} {
  func.func @kernel(%arg0: i32, %arg1: memref<2x4x256xf32, #tpu.memory_space<vmem>>, %arg2: memref<16x4xf32, #tpu.memory_space<vmem>>, %arg3: memref<4x144xf32, #tpu.memory_space<vmem>>, %arg4: memref<9x512xf32, #tpu.memory_space<vmem>>, %arg5: memref<2x512xf32, #tpu.memory_space<vmem>>, %arg6: memref<2x8x256xf32, #tpu.memory_space<vmem>>, %arg7: memref<4x512xf32, #tpu.memory_space<vmem>>, %arg8: memref<144x512xf32, #tpu.memory_space<vmem>>) attributes {dimension_semantics = [#tpu.dimension_semantics<parallel>], iteration_bounds = array<i64: 1>, scalar_prefetch = 0 : i64, scratch_operands = 2 : i64, tpu.core_type = #tpu.core_type<tc>, window_params = [{transform_indices = @transform_0, window_bounds = array<i64: 2, 4, 256>}, {pipeline_mode = #tpu.pipeline_mode<synchronous>, transform_indices = @transform_1, window_bounds = array<i64: 16, 4>}, {pipeline_mode = #tpu.pipeline_mode<synchronous>, transform_indices = @transform_2, window_bounds = array<i64: 4, 144>}, {pipeline_mode = #tpu.pipeline_mode<synchronous>, transform_indices = @transform_3, window_bounds = array<i64: 9, 512>}, {pipeline_mode = #tpu.pipeline_mode<synchronous>, transform_indices = @transform_4, window_bounds = array<i64: 2, 512>}, {transform_indices = @transform_5, window_bounds = array<i64: 2, 8, 256>}]} {
    %c0 = arith.constant 0 : index
    %c0_0 = arith.constant 0 : index
    %c0_1 = arith.constant 0 : index
    %0 = vector.load %arg1[%c0, %c0_0, %c0_1] : memref<2x4x256xf32, #tpu.memory_space<vmem>>, vector<2x4x256xf32>
    %c0_2 = arith.constant 0 : index
    %c0_3 = arith.constant 0 : index
    %1 = vector.load %arg2[%c0_2, %c0_3] : memref<16x4xf32, #tpu.memory_space<vmem>>, vector<16x4xf32>
    %c0_4 = arith.constant 0 : index
    %c0_5 = arith.constant 0 : index
    %2 = vector.load %arg3[%c0_4, %c0_5] : memref<4x144xf32, #tpu.memory_space<vmem>>, vector<4x144xf32>
    %c0_6 = arith.constant 0 : index
    %c0_7 = arith.constant 0 : index
    %3 = vector.load %arg4[%c0_6, %c0_7] : memref<9x512xf32, #tpu.memory_space<vmem>>, vector<9x512xf32>
    %cst = arith.constant dense<0.000000e+00> : vector<2x4xf32>
    %4 = vector.multi_reduction <add>, %0, %cst [2] : vector<2x4x256xf32> to vector<2x4xf32>
    %5 = vector.shape_cast %4 : vector<2x4xf32> to vector<2x4x1xf32>
    %cst_8 = arith.constant 3.906250e-03 : f32
    %6 = vector.broadcast %cst_8 : f32 to vector<2x4x1xf32>
    %7 = arith.mulf %5, %6 : vector<2x4x1xf32>
    %8 = arith.mulf %0, %0 : vector<2x4x256xf32>
    %cst_9 = arith.constant dense<0.000000e+00> : vector<2x4xf32>
    %9 = vector.multi_reduction <add>, %8, %cst_9 [2] : vector<2x4x256xf32> to vector<2x4xf32>
    %10 = vector.shape_cast %9 : vector<2x4xf32> to vector<2x4x1xf32>
    %cst_10 = arith.constant 3.906250e-03 : f32
    %11 = vector.broadcast %cst_10 : f32 to vector<2x4x1xf32>
    %12 = arith.mulf %10, %11 : vector<2x4x1xf32>
    %13 = arith.mulf %7, %7 : vector<2x4x1xf32>
    %14 = arith.subf %12, %13 : vector<2x4x1xf32>
    %cst_11 = arith.constant 9.99999974E-6 : f32
    %15 = vector.broadcast %cst_11 : f32 to vector<2x4x1xf32>
    %16 = arith.addf %14, %15 : vector<2x4x1xf32>
    %17 = math.rsqrt %16 : vector<2x4x1xf32>
    %18 = vector.broadcast %7 : vector<2x4x1xf32> to vector<2x4x256xf32>
    %19 = arith.subf %0, %18 : vector<2x4x256xf32>
    %20 = vector.broadcast %17 : vector<2x4x1xf32> to vector<2x4x256xf32>
    %21 = arith.mulf %19, %20 : vector<2x4x256xf32>
    %cst_12 = arith.constant 0.000000e+00 : f32
    %22 = vector.broadcast %cst_12 : f32 to vector<2x4x256xf32>
    %23 = arith.maximumf %21, %22 : vector<2x4x256xf32>
    %24 = vector.extract_strided_slice %23 {offsets = [0, 0, 0], sizes = [1, 4, 256], strides = [1, 1, 1]} : vector<2x4x256xf32> to vector<1x4x256xf32>
    %25 = vector.shape_cast %24 : vector<1x4x256xf32> to vector<4x256xf32>
    %c0_13 = arith.constant 0 : index
    %c0_14 = arith.constant 0 : index
    %26 = vector.load %arg7[%c0_13, %c0_14] : memref<4x512xf32, #tpu.memory_space<vmem>>, vector<4x256xf32>
    tpu.vector_store %arg7[%c0_13, %c0_14], %25 {strides = array<i32>} : memref<4x512xf32, #tpu.memory_space<vmem>>, vector<4x256xf32>,
    %27 = vector.extract_strided_slice %23 {offsets = [1, 0, 0], sizes = [1, 4, 256], strides = [1, 1, 1]} : vector<2x4x256xf32> to vector<1x4x256xf32>
    %28 = vector.shape_cast %27 : vector<1x4x256xf32> to vector<4x256xf32>
    %c0_15 = arith.constant 0 : index
    %c256 = arith.constant 256 : index
    %29 = vector.load %arg7[%c0_15, %c256] : memref<4x512xf32, #tpu.memory_space<vmem>>, vector<4x256xf32>
    tpu.vector_store %arg7[%c0_15, %c256], %28 {strides = array<i32>} : memref<4x512xf32, #tpu.memory_space<vmem>>, vector<4x256xf32>,
    %c0_16 = arith.constant 0 : index
    %c0_17 = arith.constant 0 : index
    %30 = vector.load %arg7[%c0_16, %c0_17] : memref<4x512xf32, #tpu.memory_space<vmem>>, vector<4x512xf32>
    %cst_18 = arith.constant dense<0.000000e+00> : vector<16x512xf32>
    %31 = tpu.matmul %1, %30, %cst_18 {dimension_numbers = #tpu.dot_dimension_numbers<[1], [0], [0], [1], [0, 0, 1, 1], [], []>} : vector<16x4xf32>, vector<4x512xf32>, vector<16x512xf32> -> vector<16x512xf32>
    %c0_19 = arith.constant 0 : index
    %c0_20 = arith.constant 0 : index
    %32 = vector.load %arg5[%c0_19, %c0_20] : memref<2x512xf32, #tpu.memory_space<vmem>>, vector<2x512xf32>
    %cst_21 = arith.constant dense<0.000000e+00> : vector<16x2xf32>
    %33 = tpu.matmul %31, %32, %cst_21 {dimension_numbers = #tpu.dot_dimension_numbers<[1], [1], [0], [0], [0, 0, 1, 0], [], []>} : vector<16x512xf32>, vector<2x512xf32>, vector<16x2xf32> -> vector<16x2xf32>
    %cst_22 = arith.constant 3.906250e-03 : f32
    %34 = vector.broadcast %cst_22 : f32 to vector<16x2xf32>
    %35 = arith.mulf %33, %34 : vector<16x2xf32>
    %36 = arith.mulf %31, %31 : vector<16x512xf32>
    %cst_23 = arith.constant dense<0.000000e+00> : vector<16x2xf32>
    %37 = tpu.matmul %36, %32, %cst_23 {dimension_numbers = #tpu.dot_dimension_numbers<[1], [1], [0], [0], [0, 0, 1, 0], [], []>} : vector<16x512xf32>, vector<2x512xf32>, vector<16x2xf32> -> vector<16x2xf32>
    %cst_24 = arith.constant 3.906250e-03 : f32
    %38 = vector.broadcast %cst_24 : f32 to vector<16x2xf32>
    %39 = arith.mulf %37, %38 : vector<16x2xf32>
    %40 = arith.mulf %35, %35 : vector<16x2xf32>
    %41 = arith.subf %39, %40 : vector<16x2xf32>
    %cst_25 = arith.constant 9.99999974E-6 : f32
    %42 = vector.broadcast %cst_25 : f32 to vector<16x2xf32>
    %43 = arith.addf %41, %42 : vector<16x2xf32>
    %44 = math.rsqrt %43 : vector<16x2xf32>
    %cst_26 = arith.constant dense<0.000000e+00> : vector<16x512xf32>
    %45 = tpu.matmul %44, %32, %cst_26 {dimension_numbers = #tpu.dot_dimension_numbers<[1], [0], [0], [1], [0, 0, 1, 1], [], []>} : vector<16x2xf32>, vector<2x512xf32>, vector<16x512xf32> -> vector<16x512xf32>
    %46 = arith.mulf %35, %44 : vector<16x2xf32>
    %cst_27 = arith.constant dense<0.000000e+00> : vector<16x512xf32>
    %47 = tpu.matmul %46, %32, %cst_27 {dimension_numbers = #tpu.dot_dimension_numbers<[1], [0], [0], [1], [0, 0, 1, 1], [], []>} : vector<16x2xf32>, vector<2x512xf32>, vector<16x512xf32> -> vector<16x512xf32>
    %48 = arith.mulf %31, %45 : vector<16x512xf32>
    %49 = arith.subf %48, %47 : vector<16x512xf32>
    %cst_28 = arith.constant 0.000000e+00 : f32
    %50 = vector.broadcast %cst_28 : f32 to vector<16x512xf32>
    %51 = arith.maximumf %49, %50 : vector<16x512xf32>
    %c17_i32 = arith.constant 17 : i32
    %52 = tpu.dynamic_rotate %51 by %c17_i32 dim 1 : vector<16x512xf32>, i32 -> vector<16x512xf32>
    %53 = vector.extract_strided_slice %3 {offsets = [0, 0], sizes = [1, 512], strides = [1, 1]} : vector<9x512xf32> to vector<1x512xf32>
    %54 = vector.broadcast %53 : vector<1x512xf32> to vector<16x512xf32>
    %55 = arith.mulf %52, %54 : vector<16x512xf32>
    %c0_29 = arith.constant 0 : index
    %c0_30 = arith.constant 0 : index
    %56 = vector.load %arg8[%c0_29, %c0_30] : memref<144x512xf32, #tpu.memory_space<vmem>>, vector<16x512xf32>
    tpu.vector_store %arg8[%c0_29, %c0_30], %55 {strides = array<i32>} : memref<144x512xf32, #tpu.memory_space<vmem>>, vector<16x512xf32>,
    %c16_i32 = arith.constant 16 : i32
    %57 = tpu.dynamic_rotate %51 by %c16_i32 dim 1 : vector<16x512xf32>, i32 -> vector<16x512xf32>
    %58 = vector.extract_strided_slice %3 {offsets = [1, 0], sizes = [1, 512], strides = [1, 1]} : vector<9x512xf32> to vector<1x512xf32>
    %59 = vector.broadcast %58 : vector<1x512xf32> to vector<16x512xf32>
    %60 = arith.mulf %57, %59 : vector<16x512xf32>
    %c16 = arith.constant 16 : index
    %c0_31 = arith.constant 0 : index
    %61 = vector.load %arg8[%c16, %c0_31] : memref<144x512xf32, #tpu.memory_space<vmem>>, vector<16x512xf32>
    tpu.vector_store %arg8[%c16, %c0_31], %60 {strides = array<i32>} : memref<144x512xf32, #tpu.memory_space<vmem>>, vector<16x512xf32>,
    %c15_i32 = arith.constant 15 : i32
    %62 = tpu.dynamic_rotate %51 by %c15_i32 dim 1 : vector<16x512xf32>, i32 -> vector<16x512xf32>
    %63 = vector.extract_strided_slice %3 {offsets = [2, 0], sizes = [1, 512], strides = [1, 1]} : vector<9x512xf32> to vector<1x512xf32>
    %64 = vector.broadcast %63 : vector<1x512xf32> to vector<16x512xf32>
    %65 = arith.mulf %62, %64 : vector<16x512xf32>
    %c32 = arith.constant 32 : index
    %c0_32 = arith.constant 0 : index
    %66 = vector.load %arg8[%c32, %c0_32] : memref<144x512xf32, #tpu.memory_space<vmem>>, vector<16x512xf32>
    tpu.vector_store %arg8[%c32, %c0_32], %65 {strides = array<i32>} : memref<144x512xf32, #tpu.memory_space<vmem>>, vector<16x512xf32>,
    %c1_i32 = arith.constant 1 : i32
    %67 = tpu.dynamic_rotate %51 by %c1_i32 dim 1 : vector<16x512xf32>, i32 -> vector<16x512xf32>
    %68 = vector.extract_strided_slice %3 {offsets = [3, 0], sizes = [1, 512], strides = [1, 1]} : vector<9x512xf32> to vector<1x512xf32>
    %69 = vector.broadcast %68 : vector<1x512xf32> to vector<16x512xf32>
    %70 = arith.mulf %67, %69 : vector<16x512xf32>
    %c48 = arith.constant 48 : index
    %c0_33 = arith.constant 0 : index
    %71 = vector.load %arg8[%c48, %c0_33] : memref<144x512xf32, #tpu.memory_space<vmem>>, vector<16x512xf32>
    tpu.vector_store %arg8[%c48, %c0_33], %70 {strides = array<i32>} : memref<144x512xf32, #tpu.memory_space<vmem>>, vector<16x512xf32>,
    %72 = vector.extract_strided_slice %3 {offsets = [4, 0], sizes = [1, 512], strides = [1, 1]} : vector<9x512xf32> to vector<1x512xf32>
    %73 = vector.broadcast %72 : vector<1x512xf32> to vector<16x512xf32>
    %74 = arith.mulf %51, %73 : vector<16x512xf32>
    %c64 = arith.constant 64 : index
    %c0_34 = arith.constant 0 : index
    %75 = vector.load %arg8[%c64, %c0_34] : memref<144x512xf32, #tpu.memory_space<vmem>>, vector<16x512xf32>
    tpu.vector_store %arg8[%c64, %c0_34], %74 {strides = array<i32>} : memref<144x512xf32, #tpu.memory_space<vmem>>, vector<16x512xf32>,
    %c511_i32 = arith.constant 511 : i32
    %76 = tpu.dynamic_rotate %51 by %c511_i32 dim 1 : vector<16x512xf32>, i32 -> vector<16x512xf32>
    %77 = vector.extract_strided_slice %3 {offsets = [5, 0], sizes = [1, 512], strides = [1, 1]} : vector<9x512xf32> to vector<1x512xf32>
    %78 = vector.broadcast %77 : vector<1x512xf32> to vector<16x512xf32>
    %79 = arith.mulf %76, %78 : vector<16x512xf32>
    %c80 = arith.constant 80 : index
    %c0_35 = arith.constant 0 : index
    %80 = vector.load %arg8[%c80, %c0_35] : memref<144x512xf32, #tpu.memory_space<vmem>>, vector<16x512xf32>
    tpu.vector_store %arg8[%c80, %c0_35], %79 {strides = array<i32>} : memref<144x512xf32, #tpu.memory_space<vmem>>, vector<16x512xf32>,
    %c497_i32 = arith.constant 497 : i32
    %81 = tpu.dynamic_rotate %51 by %c497_i32 dim 1 : vector<16x512xf32>, i32 -> vector<16x512xf32>
    %82 = vector.extract_strided_slice %3 {offsets = [6, 0], sizes = [1, 512], strides = [1, 1]} : vector<9x512xf32> to vector<1x512xf32>
    %83 = vector.broadcast %82 : vector<1x512xf32> to vector<16x512xf32>
    %84 = arith.mulf %81, %83 : vector<16x512xf32>
    %c96 = arith.constant 96 : index
    %c0_36 = arith.constant 0 : index
    %85 = vector.load %arg8[%c96, %c0_36] : memref<144x512xf32, #tpu.memory_space<vmem>>, vector<16x512xf32>
    tpu.vector_store %arg8[%c96, %c0_36], %84 {strides = array<i32>} : memref<144x512xf32, #tpu.memory_space<vmem>>, vector<16x512xf32>,
    %c496_i32 = arith.constant 496 : i32
    %86 = tpu.dynamic_rotate %51 by %c496_i32 dim 1 : vector<16x512xf32>, i32 -> vector<16x512xf32>
    %87 = vector.extract_strided_slice %3 {offsets = [7, 0], sizes = [1, 512], strides = [1, 1]} : vector<9x512xf32> to vector<1x512xf32>
    %88 = vector.broadcast %87 : vector<1x512xf32> to vector<16x512xf32>
    %89 = arith.mulf %86, %88 : vector<16x512xf32>
    %c112 = arith.constant 112 : index
    %c0_37 = arith.constant 0 : index
    %90 = vector.load %arg8[%c112, %c0_37] : memref<144x512xf32, #tpu.memory_space<vmem>>, vector<16x512xf32>
    tpu.vector_store %arg8[%c112, %c0_37], %89 {strides = array<i32>} : memref<144x512xf32, #tpu.memory_space<vmem>>, vector<16x512xf32>,
    %c495_i32 = arith.constant 495 : i32
    %91 = tpu.dynamic_rotate %51 by %c495_i32 dim 1 : vector<16x512xf32>, i32 -> vector<16x512xf32>
    %92 = vector.extract_strided_slice %3 {offsets = [8, 0], sizes = [1, 512], strides = [1, 1]} : vector<9x512xf32> to vector<1x512xf32>
    %93 = vector.broadcast %92 : vector<1x512xf32> to vector<16x512xf32>
    %94 = arith.mulf %91, %93 : vector<16x512xf32>
    %c128 = arith.constant 128 : index
    %c0_38 = arith.constant 0 : index
    %95 = vector.load %arg8[%c128, %c0_38] : memref<144x512xf32, #tpu.memory_space<vmem>>, vector<16x512xf32>
    tpu.vector_store %arg8[%c128, %c0_38], %94 {strides = array<i32>} : memref<144x512xf32, #tpu.memory_space<vmem>>, vector<16x512xf32>,
    %c0_39 = arith.constant 0 : index
    %c0_40 = arith.constant 0 : index
    %96 = vector.load %arg8[%c0_39, %c0_40] : memref<144x512xf32, #tpu.memory_space<vmem>>, vector<144x512xf32>
    %cst_41 = arith.constant dense<0.000000e+00> : vector<4x512xf32>
    %97 = tpu.matmul %2, %96, %cst_41 {dimension_numbers = #tpu.dot_dimension_numbers<[1], [0], [0], [1], [0, 0, 1, 1], [], []>} : vector<4x144xf32>, vector<144x512xf32>, vector<4x512xf32> -> vector<4x512xf32>
    %98 = vector.extract_strided_slice %0 {offsets = [0, 0, 0], sizes = [1, 4, 256], strides = [1, 1, 1]} : vector<2x4x256xf32> to vector<1x4x256xf32>
    %99 = vector.shape_cast %98 : vector<1x4x256xf32> to vector<4x256xf32>
    %100 = vector.extract_strided_slice %97 {offsets = [0, 0], sizes = [4, 256], strides = [1, 1]} : vector<4x512xf32> to vector<4x256xf32>
    %101 = tpu.concatenate %99, %100 in 0 : vector<4x256xf32>, vector<4x256xf32> -> vector<8x256xf32>
    %c0_42 = arith.constant 0 : index
    %c0_43 = arith.constant 0 : index
    %c0_44 = arith.constant 0 : index
    %102 = vector.load %arg6[%c0_42, %c0_43, %c0_44] : memref<2x8x256xf32, #tpu.memory_space<vmem>>, vector<1x8x256xf32>
    %103 = vector.shape_cast %102 : vector<1x8x256xf32> to vector<8x256xf32>
    %104 = vector.shape_cast %101 : vector<8x256xf32> to vector<1x8x256xf32>
    tpu.vector_store %arg6[%c0_42, %c0_43, %c0_44], %104 {strides = array<i32>} : memref<2x8x256xf32, #tpu.memory_space<vmem>>, vector<1x8x256xf32>,
    %105 = vector.extract_strided_slice %0 {offsets = [1, 0, 0], sizes = [1, 4, 256], strides = [1, 1, 1]} : vector<2x4x256xf32> to vector<1x4x256xf32>
    %106 = vector.shape_cast %105 : vector<1x4x256xf32> to vector<4x256xf32>
    %107 = vector.extract_strided_slice %97 {offsets = [0, 256], sizes = [4, 256], strides = [1, 1]} : vector<4x512xf32> to vector<4x256xf32>
    %108 = tpu.concatenate %106, %107 in 0 : vector<4x256xf32>, vector<4x256xf32> -> vector<8x256xf32>
    %c1 = arith.constant 1 : index
    %c0_45 = arith.constant 0 : index
    %c0_46 = arith.constant 0 : index
    %109 = vector.load %arg6[%c1, %c0_45, %c0_46] : memref<2x8x256xf32, #tpu.memory_space<vmem>>, vector<1x8x256xf32>
    %110 = vector.shape_cast %109 : vector<1x8x256xf32> to vector<8x256xf32>
    %111 = vector.shape_cast %108 : vector<8x256xf32> to vector<1x8x256xf32>
    tpu.vector_store %arg6[%c1, %c0_45, %c0_46], %111 {strides = array<i32>} : memref<2x8x256xf32, #tpu.memory_space<vmem>>, vector<1x8x256xf32>,
    return
  }
  func.func @transform_0(%arg0: i32) -> (i32, i32, i32) {
    %c0_i32 = arith.constant 0 : i32
    %c0_i32_0 = arith.constant 0 : i32
    %c0_i32_1 = arith.constant 0 : i32
    return %arg0, %c0_i32, %c0_i32_0 : i32, i32, i32
  }
  func.func @transform_1(%arg0: i32) -> (i32, i32) {
    %c0_i32 = arith.constant 0 : i32
    %c0_i32_0 = arith.constant 0 : i32
    %c0_i32_1 = arith.constant 0 : i32
    return %c0_i32, %c0_i32_0 : i32, i32
  }
  func.func @transform_2(%arg0: i32) -> (i32, i32) {
    %c0_i32 = arith.constant 0 : i32
    %c0_i32_0 = arith.constant 0 : i32
    %c0_i32_1 = arith.constant 0 : i32
    return %c0_i32, %c0_i32_0 : i32, i32
  }
  func.func @transform_3(%arg0: i32) -> (i32, i32) {
    %c0_i32 = arith.constant 0 : i32
    %c0_i32_0 = arith.constant 0 : i32
    %c0_i32_1 = arith.constant 0 : i32
    return %c0_i32, %c0_i32_0 : i32, i32
  }
  func.func @transform_4(%arg0: i32) -> (i32, i32) {
    %c0_i32 = arith.constant 0 : i32
    %c0_i32_0 = arith.constant 0 : i32
    %c0_i32_1 = arith.constant 0 : i32
    return %c0_i32, %c0_i32_0 : i32, i32
  }
  func.func @transform_5(%arg0: i32) -> (i32, i32, i32) {
    %c0_i32 = arith.constant 0 : i32
    %c0_i32_0 = arith.constant 0 : i32
    %c0_i32_1 = arith.constant 0 : i32
    return %arg0, %c0_i32, %c0_i32_0 : i32, i32, i32
  }
}

</mosaic_0001>

<llo_original>
// kernel: tpu_custom_call.1
$region0: #{tpu_custom_call.1}
  #allocation0 [shape = 'u32[]', space=smem, size = 0x4, offset = 0x4, fixed_abs, tag = 'smem constant byte address 0x4 - core index']
  #allocation1 [shape = 'u32[144,128]{1,0:T(1,128)}', space=vmem, size = 0x12000, scoped, tag = 'internal scratch']
  #allocation2 [shape = 'f32[4,512]{1,0:T(4,128)}', space=vmem, size = 0x2000, scoped, tag = 'scratch operand']
  #allocation3 [shape = 'f32[144,512]{1,0:T(8,128)}', space=vmem, size = 0x48000, scoped, tag = 'scratch operand']
  %s0 = inlined_call_operand.vmem [shape: f32[2,4,256], index: 0, kind: input, shape index: {}]
  %s1 = inlined_call_operand.vmem [shape: f32[16,4], index: 1, kind: input, shape index: {}]
  %s2 = inlined_call_operand.vmem [shape: f32[4,144], index: 2, kind: input, shape index: {}]
  %s3 = inlined_call_operand.hbm [shape: f32[9,512], index: 3, kind: input, shape index: {}]
  %s4 = inlined_call_operand.vmem [shape: f32[2,512], index: 4, kind: input, shape index: {}]
  %s5 = inlined_call_operand.hbm [shape: f32[2,8,256], index: 5, kind: output, shape index: {}]
  %s6 = sld [smem:[#allocation0]]
  $region34: #{tpu_custom_call.1} parent=0
    _
  %s8 = ssub.s32 1, %s6
  %s9 = scalar_select 0, %s8, %s6
  $region1: #{tpu_custom_call.1} parent=0
    #allocation4 [shape = 'u8[32768]{0}', space=vmem, size = 0x8000, scoped, tag = 'input window, operand 3, single buffered']
    #allocation5 [shape = 's32[1]{0}', space=sflag, size = 0x4, scoped, tag = 'scoped memory for tpu_custom_call.1']
    #allocation6 [shape = 's32[1]{0}', space=sflag, size = 0x4, scoped, tag = 'scoped memory for tpu_custom_call.1']
    #allocation7 [shape = 'u8[16384]{0}', space=vmem, size = 0x4000, scoped, tag = 'output window, operand 0, single buffered']
    %10 = vsyncpa [#allocation5], 0
    %11 = vsyncpa [#allocation6], 0
    // Predicated region
    $region2: #{tpu_custom_call.1} parent=1 // pred_check
      _
    $region3: #{tpu_custom_call.1} parent=1 // pred_check_branch
      %13 = sbr.rel (0) target = $region5
    $region4: #{tpu_custom_call.1} parent=1 // pred_region
      _
    $region5: #{tpu_custom_call.1} parent=1 // pred_fallthru
      _
    // Predicated region
    $region6: #{tpu_custom_call.1} parent=1 // pred_check
      _
    $region7: #{tpu_custom_call.1} parent=1 // pred_check_branch
      %15 = sbr.rel (0) target = $region9
    $region8: #{tpu_custom_call.1} parent=1 // pred_region
      _
    $region9: #{tpu_custom_call.1} parent=1 // pred_fallthru
      _
    // Predicated region
    $region10: #{tpu_custom_call.1} parent=1 // pred_check
      _
    $region11: #{tpu_custom_call.1} parent=1 // pred_check_branch
      %17 = sbr.rel (0) target = $region13
    $region12: #{tpu_custom_call.1} parent=1 // pred_region
      _
    $region13: #{tpu_custom_call.1} parent=1 // pred_fallthru
      _
    // Predicated region
    $region14: #{tpu_custom_call.1} parent=1 // pred_check
      _
    $region15: #{tpu_custom_call.1} parent=1 // pred_check_branch
      %19 = sbr.rel (0) target = $region17
    $region16: #{tpu_custom_call.1} parent=1 // pred_region
      %s21 = ssub.s32 1024, 1024
      %22 = vsyncadd [#allocation5], %s21
      %s23 = sshll.u32 [#allocation4], 4
      %s24 = int_to_ptr.vmem [resolvable:$true] %s23
      %29 = dma.hbm_to_vmem [thread:$0]  %s3, 1024, %s24, [#allocation5], 512, 512, 32
    $region17: #{tpu_custom_call.1} parent=1 // pred_fallthru
      _
    // Predicated region
    $region18: #{tpu_custom_call.1} parent=1 // pred_check
      _
    $region19: #{tpu_custom_call.1} parent=1 // pred_check_branch
      %31 = sbr.rel (0) target = $region21
    $region20: #{tpu_custom_call.1} parent=1 // pred_region
      _
    $region21: #{tpu_custom_call.1} parent=1 // pred_fallthru
      _
    // Predicated region
    $region22: #{tpu_custom_call.1} parent=1 // pred_check
      _
    $region23: #{tpu_custom_call.1} parent=1 // pred_check_branch
      %33 = sbr.rel (0) target = $region25
    $region24: #{tpu_custom_call.1} parent=1 // pred_region
      %34 = dma.done [#allocation5], 1024
    $region25: #{tpu_custom_call.1} parent=1 // pred_fallthru
      _
    %v35 = vld [vmem:[%s0] sm:$0xff]
    %v36 = vld [vmem:[%s0 + $0x8] sm:$0xff]
    %v37 = vld [vmem:[%s1] sm:$0xff]
    %v38 = vld [vmem:[%s1 + $0x8] sm:$0xff]
    %v39 = vld [vmem:[%s2] sm:$0xff]
    %v40 = vld [vmem:[#allocation4] sm:$0xff]
    %v41 = vld [vmem:[#allocation4 + $0x8] sm:$0xff]
    %v42 = vld [vmem:[#allocation4 + $0x10] sm:$0xff]
    %v43 = vld [vmem:[#allocation4 + $0x18] sm:$0xff]
    %v44 = vld [vmem:[#allocation4 + $0x20] sm:$0x1]
    %v45 = vld [vmem:[#allocation4 + $0x28] sm:$0x1]
    %v46 = vld [vmem:[#allocation4 + $0x30] sm:$0x1]
    %v47 = vld [vmem:[#allocation4 + $0x38] sm:$0x1]
    %v50 = vcombine.high %v35, %v35
    %v51 = vcombine.high %v36, %v36
    %vm54 = vcmask 1043456
    %v55 = vsel %vm54, %v35, 0.0
    %v56 = vsel %vm54, %v50, 0.0
    %v57 = vadd.f32 %v55, %v56
    %58 = vadd.xlane.f32.xlu0 %v57
    %v59 = vpop.xlane.xlu0 %58
    %v60 = vsel %vm54, %v36, 0.0
    %v61 = vsel %vm54, %v51, 0.0
    %v62 = vadd.f32 %v60, %v61
    %63 = vadd.xlane.f32.xlu0 %v62
    %v64 = vpop.xlane.xlu0 %63
    %v65 = vmul.f32 %v59, 0.00390625
    %v66 = vmul.f32 %v64, 0.00390625
    %v67 = vmul.f32 %v35, %v35
    %v68 = vmul.f32 %v36, %v36
    %v71 = vcombine.high %v67, %v67
    %v72 = vcombine.high %v68, %v68
    %v75 = vsel %vm54, %v67, 0.0
    %v76 = vsel %vm54, %v71, 0.0
    %v77 = vadd.f32 %v75, %v76
    %78 = vadd.xlane.f32.xlu0 %v77
    %v79 = vpop.xlane.xlu0 %78
    %v80 = vsel %vm54, %v68, 0.0
    %v81 = vsel %vm54, %v72, 0.0
    %v82 = vadd.f32 %v80, %v81
    %83 = vadd.xlane.f32.xlu0 %v82
    %v84 = vpop.xlane.xlu0 %83
    %v85 = vmul.f32 %v79, 0.00390625
    %v86 = vmul.f32 %v84, 0.00390625
    %v87 = vmul.f32 %v65, %v65
    %v88 = vmul.f32 %v66, %v66
    %v89 = vsub.f32 %v85, %v87
    %v90 = vsub.f32 %v86, %v88
    %v91 = vadd.f32 %v89, 1e-05
    %v92 = vadd.f32 %v90, 1e-05
    %v93 = vrsqrt.pop %v91
    %v94 = vrsqrt.pop %v92
    %v98 = vunpack.c.l.s4 839922192
    %v99 = vunpack.c.0.s8 %v98
    %v100 = vlaneseq
    %v101 = vshrl.u32 %v100, 7
    %v102 = vsub.s32 %v99, %v101
    %v103 = vrot.slane %v65, %v102
    %v105 = vunpack.c.l.s4 839922192
    %v106 = vunpack.c.0.s8 %v105
    %v107 = vlaneseq
    %v108 = vshrl.u32 %v107, 7
    %v109 = vsub.s32 %v106, %v108
    %v110 = vrot.slane %v66, %v109
    %v113 = vsub.f32 %v35, %v103
    %v114 = vsub.f32 %v36, %v110
    %v118 = vunpack.c.l.s4 839922192
    %v119 = vunpack.c.0.s8 %v118
    %v120 = vlaneseq
    %v121 = vshrl.u32 %v120, 7
    %v122 = vsub.s32 %v119, %v121
    %v123 = vrot.slane %v93, %v122
    %v125 = vunpack.c.l.s4 839922192
    %v126 = vunpack.c.0.s8 %v125
    %v127 = vlaneseq
    %v128 = vshrl.u32 %v127, 7
    %v129 = vsub.s32 %v126, %v128
    %v130 = vrot.slane %v94, %v129
    %v133 = vmul.f32 %v113, %v123
    %v134 = vmul.f32 %v114, %v130
    %v135 = vmax.f32 %v133, 0.0
    %v136 = vmax.f32 %v134, 0.0
    %137 = vst [vmem:[#allocation2] sm:$0xff] %v135
    %138 = vst [vmem:[#allocation2 + $0x8] sm:$0xff] %v136
    %v139 = vld [vmem:[#allocation2] sm:$0xff]
    %v140 = vld [vmem:[#allocation2 + $0x8] sm:$0xff]
    %v143 = vcombine.high %v139, %v139
    %v144 = vcombine.high %v140, %v140
    %vm145 = vcmask 31744
    %v147 = vsel %vm145, %v37, 0
    %v150 = vsel %vm145, %v38, 0
    %v152 = vsel %vm54, %v139, 0
    %v154 = vsel %vm54, %v143, 0
    %v156 = vsel %vm54, %v140, 0
    %v158 = vsel %vm54, %v144, 0
    %160 = vmatprep.subr.mxu0 %v154
    %161 = vmatpush1.msra.mxu0 %v152
    %162 = vmatprep.subr.mxu0 0.0
    %163 = vmatpush1.msra.mxu0 0.0
    %164 = vmatprep.subr.mxu0 0.0
    %165 = vmatpush1.msra.mxu0 0.0
    %166 = vmatprep.subr.mxu0 0.0
    %167 = vmatpush1.msra.mxu0 0.0
    %168 = vmatprep.subr.mxu0 0.0
    %169 = vmatpush1.msra.mxu0 0.0
    %170 = vmatprep.subr.mxu0 0.0
    %171 = vmatpush1.msra.mxu0 0.0
    %172 = vmatprep.subr.mxu0 0.0
    %173 = vmatpush1.msra.mxu0 0.0
    %174 = vmatprep.subr.mxu0 0.0
    %175 = vmatpush1.msra.mxu0 0.0
    %176 = vmatprep.subr.mxu0 0.0
    %177 = vmatpush1.msra.mxu0 0.0
    %178 = vmatprep.subr.mxu0 0.0
    %179 = vmatpush1.msra.mxu0 0.0
    %180 = vmatprep.subr.mxu0 0.0
    %181 = vmatpush1.msra.mxu0 0.0
    %182 = vmatprep.subr.mxu0 0.0
    %183 = vmatpush1.msra.mxu0 0.0
    %184 = vmatprep.subr.mxu0 0.0
    %185 = vmatpush1.msra.mxu0 0.0
    %186 = vmatprep.subr.mxu0 0.0
    %187 = vmatpush1.msra.mxu0 0.0
    %188 = vmatprep.subr.mxu0 0.0
    %189 = vmatpush1.msra.mxu0 0.0
    %190 = vmatprep.subr.mxu0 0.0
    %191 = vmatpush1.msra.mxu0 0.0
    %192 = vmatprep.subr.mxu0 0.0
    %193 = vmatpush1.msra.mxu0 0.0
    %194 = vmatprep.subr.mxu0 0.0
    %195 = vmatpush1.msra.mxu0 0.0
    %196 = vmatprep.subr.mxu0 0.0
    %197 = vmatpush1.msra.mxu0 0.0
    %198 = vmatprep.subr.mxu0 0.0
    %199 = vmatpush1.msra.mxu0 0.0
    %200 = vmatprep.subr.mxu0 0.0
    %201 = vmatpush1.msra.mxu0 0.0
    %202 = vmatprep.subr.mxu0 0.0
    %203 = vmatpush1.msra.mxu0 0.0
    %204 = vmatprep.subr.mxu0 0.0
    %205 = vmatpush1.msra.mxu0 0.0
    %206 = vmatprep.subr.mxu0 0.0
    %207 = vmatpush1.msra.mxu0 0.0
    %208 = vmatprep.subr.mxu0 0.0
    %209 = vmatpush1.msra.mxu0 0.0
    %210 = vmatprep.subr.mxu0 0.0
    %211 = vmatpush1.msra.mxu0 0.0
    %212 = vmatprep.subr.mxu0 0.0
    %213 = vmatpush1.msra.mxu0 0.0
    %214 = vmatprep.subr.mxu0 0.0
    %215 = vmatpush1.msra.mxu0 0.0
    %216 = vmatprep.subr.mxu0 0.0
    %217 = vmatpush1.msra.mxu0 0.0
    %218 = vmatprep.subr.mxu0 0.0
    %219 = vmatpush1.msra.mxu0 0.0
    %220 = vmatprep.subr.mxu0 0.0
    %221 = vmatpush1.msra.mxu0 0.0
    %222 = vmatprep.subr.mxu0 0.0
    %223 = vmatpush1.msra.mxu0 0.0
    %224 = vmatprep.mubr.f32.mxu0 0.0
    %225 = vmatmul.mubr.f32.gmra.mrb[0].mxu0 %v147
    %v226 = vpop.f32.mrb[0].mxu0
    %v227 = vadd.f32 0.0, %v226
    %v228 = vpop.f32.mrb[0].mxu0
    %v229 = vadd.f32 0.0, %v228
    %230 = vmatprep.mubr.f32.mxu0 0.0
    %231 = vmatmul.mubr.f32.gmra.mrb[0].mxu0 %v150
    %v232 = vpop.f32.mrb[0].mxu0
    %v233 = vadd.f32 0.0, %v232
    %v234 = vpop.f32.mrb[0].mxu0
    %v235 = vadd.f32 0.0, %v234
    %236 = vdwg.mxu0
    %237 = vmatprep.subr.mxu0 %v158
    %238 = vmatpush1.msra.mxu0 %v156
    %239 = vmatprep.subr.mxu0 0.0
    %240 = vmatpush1.msra.mxu0 0.0
    %241 = vmatprep.subr.mxu0 0.0
    %242 = vmatpush1.msra.mxu0 0.0
    %243 = vmatprep.subr.mxu0 0.0
    %244 = vmatpush1.msra.mxu0 0.0
    %245 = vmatprep.subr.mxu0 0.0
    %246 = vmatpush1.msra.mxu0 0.0
    %247 = vmatprep.subr.mxu0 0.0
    %248 = vmatpush1.msra.mxu0 0.0
    %249 = vmatprep.subr.mxu0 0.0
    %250 = vmatpush1.msra.mxu0 0.0
    %251 = vmatprep.subr.mxu0 0.0
    %252 = vmatpush1.msra.mxu0 0.0
    %253 = vmatprep.subr.mxu0 0.0
    %254 = vmatpush1.msra.mxu0 0.0
    %255 = vmatprep.subr.mxu0 0.0
    %256 = vmatpush1.msra.mxu0 0.0
    %257 = vmatprep.subr.mxu0 0.0
    %258 = vmatpush1.msra.mxu0 0.0
    %259 = vmatprep.subr.mxu0 0.0
    %260 = vmatpush1.msra.mxu0 0.0
    %261 = vmatprep.subr.mxu0 0.0
    %262 = vmatpush1.msra.mxu0 0.0
    %263 = vmatprep.subr.mxu0 0.0
    %264 = vmatpush1.msra.mxu0 0.0
    %265 = vmatprep.subr.mxu0 0.0
    %266 = vmatpush1.msra.mxu0 0.0
    %267 = vmatprep.subr.mxu0 0.0
    %268 = vmatpush1.msra.mxu0 0.0
    %269 = vmatprep.subr.mxu0 0.0
    %270 = vmatpush1.msra.mxu0 0.0
    %271 = vmatprep.subr.mxu0 0.0
    %272 = vmatpush1.msra.mxu0 0.0
    %273 = vmatprep.subr.mxu0 0.0
    %274 = vmatpush1.msra.mxu0 0.0
    %275 = vmatprep.subr.mxu0 0.0
    %276 = vmatpush1.msra.mxu0 0.0
    %277 = vmatprep.subr.mxu0 0.0
    %278 = vmatpush1.msra.mxu0 0.0
    %279 = vmatprep.subr.mxu0 0.0
    %280 = vmatpush1.msra.mxu0 0.0
    %281 = vmatprep.subr.mxu0 0.0
    %282 = vmatpush1.msra.mxu0 0.0
    %283 = vmatprep.subr.mxu0 0.0
    %284 = vmatpush1.msra.mxu0 0.0
    %285 = vmatprep.subr.mxu0 0.0
    %286 = vmatpush1.msra.mxu0 0.0
    %287 = vmatprep.subr.mxu0 0.0
    %288 = vmatpush1.msra.mxu0 0.0
    %289 = vmatprep.subr.mxu0 0.0
    %290 = vmatpush1.msra.mxu0 0.0
    %291 = vmatprep.subr.mxu0 0.0
    %292 = vmatpush1.msra.mxu0 0.0
    %293 = vmatprep.subr.mxu0 0.0
    %294 = vmatpush1.msra.mxu0 0.0
    %295 = vmatprep.subr.mxu0 0.0
    %296 = vmatpush1.msra.mxu0 0.0
    %297 = vmatprep.subr.mxu0 0.0
    %298 = vmatpush1.msra.mxu0 0.0
    %299 = vmatprep.subr.mxu0 0.0
    %300 = vmatpush1.msra.mxu0 0.0
    %301 = vmatprep.mubr.f32.mxu0 0.0
    %302 = vmatmul.mubr.f32.gmra.mrb[0].mxu0 %v147
    %v303 = vpop.f32.mrb[0].mxu0
    %v304 = vadd.f32 0.0, %v303
    %v305 = vpop.f32.mrb[0].mxu0
    %v306 = vadd.f32 0.0, %v305
    %307 = vmatprep.mubr.f32.mxu0 0.0
    %308 = vmatmul.mubr.f32.gmra.mrb[0].mxu0 %v150
    %v309 = vpop.f32.mrb[0].mxu0
    %v310 = vadd.f32 0.0, %v309
    %v311 = vpop.f32.mrb[0].mxu0
    %v312 = vadd.f32 0.0, %v311
    %313 = vdwg.mxu0
    %v314 = vld [vmem:[%s4] sm:$0xff]
    %v316 = vcombine.high %v314, %v314
    %v318 = vunpack.c.l.s4 1983009808
    %v319 = vunpack.c.0.s8 %v318
    %v320 = vlaneseq
    %v321 = vshrl.u32 %v320, 7
    %v322 = vsub.s32 %v319, %v321
    %v323 = vrot.slane %v314, %v322
    %v325 = vunpack.c.l.s4 1983009808
    %v326 = vunpack.c.0.s8 %v325
    %v327 = vlaneseq
    %v328 = vshrl.u32 %v327, 7
    %v329 = vsub.s32 %v326, %v328
    %v330 = vrot.slane %v316, %v329
    %v331 = vcombine.high %v323, %v323
    %v332 = vcombine.high %v330, %v330
    %337 = vmatprep.subr.mxu0 %v331
    %338 = vmatpush1.xpose.msra.mxu0 %v323
    %339 = vmatprep.subr.mxu0 0.0
    %340 = vmatpush1.xpose.msra.mxu0 0.0
    %341 = vmatprep.subr.mxu0 0.0
    %342 = vmatpush1.xpose.msra.mxu0 0.0
    %343 = vmatprep.subr.mxu0 0.0
    %344 = vmatpush1.xpose.msra.mxu0 0.0
    %345 = vmatprep.subr.mxu0 0.0
    %346 = vmatpush1.xpose.msra.mxu0 0.0
    %347 = vmatprep.subr.mxu0 0.0
    %348 = vmatpush1.xpose.msra.mxu0 0.0
    %349 = vmatprep.subr.mxu0 0.0
    %350 = vmatpush1.xpose.msra.mxu0 0.0
    %351 = vmatprep.subr.mxu0 0.0
    %352 = vmatpush1.xpose.msra.mxu0 0.0
    %353 = vmatprep.subr.mxu0 0.0
    %354 = vmatpush1.xpose.msra.mxu0 0.0
    %355 = vmatprep.subr.mxu0 0.0
    %356 = vmatpush1.xpose.msra.mxu0 0.0
    %357 = vmatprep.subr.mxu0 0.0
    %358 = vmatpush1.xpose.msra.mxu0 0.0
    %359 = vmatprep.subr.mxu0 0.0
    %360 = vmatpush1.xpose.msra.mxu0 0.0
    %361 = vmatprep.subr.mxu0 0.0
    %362 = vmatpush1.xpose.msra.mxu0 0.0
    %363 = vmatprep.subr.mxu0 0.0
    %364 = vmatpush1.xpose.msra.mxu0 0.0
    %365 = vmatprep.subr.mxu0 0.0
    %366 = vmatpush1.xpose.msra.mxu0 0.0
    %367 = vmatprep.subr.mxu0 0.0
    %368 = vmatpush1.xpose.msra.mxu0 0.0
    %369 = vmatprep.subr.mxu0 0.0
    %370 = vmatpush1.xpose.msra.mxu0 0.0
    %371 = vmatprep.subr.mxu0 0.0
    %372 = vmatpush1.xpose.msra.mxu0 0.0
    %373 = vmatprep.subr.mxu0 0.0
    %374 = vmatpush1.xpose.msra.mxu0 0.0
    %375 = vmatprep.subr.mxu0 0.0
    %376 = vmatpush1.xpose.msra.mxu0 0.0
    %377 = vmatprep.subr.mxu0 0.0
    %378 = vmatpush1.xpose.msra.mxu0 0.0
    %379 = vmatprep.subr.mxu0 0.0
    %380 = vmatpush1.xpose.msra.mxu0 0.0
    %381 = vmatprep.subr.mxu0 0.0
    %382 = vmatpush1.xpose.msra.mxu0 0.0
    %383 = vmatprep.subr.mxu0 0.0
    %384 = vmatpush1.xpose.msra.mxu0 0.0
    %385 = vmatprep.subr.mxu0 0.0
    %386 = vmatpush1.xpose.msra.mxu0 0.0
    %387 = vmatprep.subr.mxu0 0.0
    %388 = vmatpush1.xpose.msra.mxu0 0.0
    %389 = vmatprep.subr.mxu0 0.0
    %390 = vmatpush1.xpose.msra.mxu0 0.0
    %391 = vmatprep.subr.mxu0 0.0
    %392 = vmatpush1.xpose.msra.mxu0 0.0
    %393 = vmatprep.subr.mxu0 0.0
    %394 = vmatpush1.xpose.msra.mxu0 0.0
    %395 = vmatprep.subr.mxu0 0.0
    %396 = vmatpush1.xpose.msra.mxu0 0.0
    %397 = vmatprep.subr.mxu0 0.0
    %398 = vmatpush1.xpose.msra.mxu0 0.0
    %399 = vmatprep.subr.mxu0 0.0
    %400 = vmatpush1.xpose.msra.mxu0 0.0
    %401 = vmatprep.mubr.f32.mxu0 %v229
    %402 = vmatmul.mubr.f32.gmra.mrb[0].mxu0 %v227
    %v403 = vpop.f32.mrb[0].mxu0
    %v404 = vadd.f32 0.0, %v403
    %v405 = vpop.f32.mrb[0].mxu0
    %406 = vmatprep.mubr.f32.mxu0 %v235
    %407 = vmatmul.mubr.f32.gmra.mrb[0].mxu0 %v233
    %v408 = vpop.f32.mrb[0].mxu0
    %v409 = vadd.f32 0.0, %v408
    %v410 = vpop.f32.mrb[0].mxu0
    %411 = vdwg.mxu0
    %412 = vmatprep.subr.mxu0 %v332
    %413 = vmatpush1.xpose.msra.mxu0 %v330
    %414 = vmatprep.subr.mxu0 0.0
    %415 = vmatpush1.xpose.msra.mxu0 0.0
    %416 = vmatprep.subr.mxu0 0.0
    %417 = vmatpush1.xpose.msra.mxu0 0.0
    %418 = vmatprep.subr.mxu0 0.0
    %419 = vmatpush1.xpose.msra.mxu0 0.0
    %420 = vmatprep.subr.mxu0 0.0
    %421 = vmatpush1.xpose.msra.mxu0 0.0
    %422 = vmatprep.subr.mxu0 0.0
    %423 = vmatpush1.xpose.msra.mxu0 0.0
    %424 = vmatprep.subr.mxu0 0.0
    %425 = vmatpush1.xpose.msra.mxu0 0.0
    %426 = vmatprep.subr.mxu0 0.0
    %427 = vmatpush1.xpose.msra.mxu0 0.0
    %428 = vmatprep.subr.mxu0 0.0
    %429 = vmatpush1.xpose.msra.mxu0 0.0
    %430 = vmatprep.subr.mxu0 0.0
    %431 = vmatpush1.xpose.msra.mxu0 0.0
    %432 = vmatprep.subr.mxu0 0.0
    %433 = vmatpush1.xpose.msra.mxu0 0.0
    %434 = vmatprep.subr.mxu0 0.0
    %435 = vmatpush1.xpose.msra.mxu0 0.0
    %436 = vmatprep.subr.mxu0 0.0
    %437 = vmatpush1.xpose.msra.mxu0 0.0
    %438 = vmatprep.subr.mxu0 0.0
    %439 = vmatpush1.xpose.msra.mxu0 0.0
    %440 = vmatprep.subr.mxu0 0.0
    %441 = vmatpush1.xpose.msra.mxu0 0.0
    %442 = vmatprep.subr.mxu0 0.0
    %443 = vmatpush1.xpose.msra.mxu0 0.0
    %444 = vmatprep.subr.mxu0 0.0
    %445 = vmatpush1.xpose.msra.mxu0 0.0
    %446 = vmatprep.subr.mxu0 0.0
    %447 = vmatpush1.xpose.msra.mxu0 0.0
    %448 = vmatprep.subr.mxu0 0.0
    %449 = vmatpush1.xpose.msra.mxu0 0.0
    %450 = vmatprep.subr.mxu0 0.0
    %451 = vmatpush1.xpose.msra.mxu0 0.0
    %452 = vmatprep.subr.mxu0 0.0
    %453 = vmatpush1.xpose.msra.mxu0 0.0
    %454 = vmatprep.subr.mxu0 0.0
    %455 = vmatpush1.xpose.msra.mxu0 0.0
    %456 = vmatprep.subr.mxu0 0.0
    %457 = vmatpush1.xpose.msra.mxu0 0.0
    %458 = vmatprep.subr.mxu0 0.0
    %459 = vmatpush1.xpose.msra.mxu0 0.0
    %460 = vmatprep.subr.mxu0 0.0
    %461 = vmatpush1.xpose.msra.mxu0 0.0
    %462 = vmatprep.subr.mxu0 0.0
    %463 = vmatpush1.xpose.msra.mxu0 0.0
    %464 = vmatprep.subr.mxu0 0.0
    %465 = vmatpush1.xpose.msra.mxu0 0.0
    %466 = vmatprep.subr.mxu0 0.0
    %467 = vmatpush1.xpose.msra.mxu0 0.0
    %468 = vmatprep.subr.mxu0 0.0
    %469 = vmatpush1.xpose.msra.mxu0 0.0
    %470 = vmatprep.subr.mxu0 0.0
    %471 = vmatpush1.xpose.msra.mxu0 0.0
    %472 = vmatprep.subr.mxu0 0.0
    %473 = vmatpush1.xpose.msra.mxu0 0.0
    %474 = vmatprep.subr.mxu0 0.0
    %475 = vmatpush1.xpose.msra.mxu0 0.0
    %476 = vmatprep.mubr.f32.mxu0 %v306
    %477 = vmatmul.mubr.f32.gmra.mrb[0].mxu0 %v304
    %v478 = vpop.f32.mrb[0].mxu0
    %v479 = vadd.f32 %v404, %v478
    %v480 = vpop.f32.mrb[0].mxu0
    %481 = vmatprep.mubr.f32.mxu0 %v312
    %482 = vmatmul.mubr.f32.gmra.mrb[0].mxu0 %v310
    %v483 = vpop.f32.mrb[0].mxu0
    %v484 = vadd.f32 %v409, %v483
    %v485 = vpop.f32.mrb[0].mxu0
    %486 = vdwg.mxu0
    %v487 = vmul.f32 %v479, 0.00390625
    %v488 = vmul.f32 %v484, 0.00390625
    %v489 = vmul.f32 %v227, %v227
    %v490 = vmul.f32 %v229, %v229
    %v491 = vmul.f32 %v304, %v304
    %v492 = vmul.f32 %v306, %v306
    %v493 = vmul.f32 %v233, %v233
    %v494 = vmul.f32 %v235, %v235
    %v495 = vmul.f32 %v310, %v310
    %v496 = vmul.f32 %v312, %v312
    %497 = vmatprep.subr.mxu0 %v331
    %498 = vmatpush1.xpose.msra.mxu0 %v323
    %499 = vmatprep.subr.mxu0 0.0
    %500 = vmatpush1.xpose.msra.mxu0 0.0
    %501 = vmatprep.subr.mxu0 0.0
    %502 = vmatpush1.xpose.msra.mxu0 0.0
    %503 = vmatprep.subr.mxu0 0.0
    %504 = vmatpush1.xpose.msra.mxu0 0.0
    %505 = vmatprep.subr.mxu0 0.0
    %506 = vmatpush1.xpose.msra.mxu0 0.0
    %507 = vmatprep.subr.mxu0 0.0
    %508 = vmatpush1.xpose.msra.mxu0 0.0
    %509 = vmatprep.subr.mxu0 0.0
    %510 = vmatpush1.xpose.msra.mxu0 0.0
    %511 = vmatprep.subr.mxu0 0.0
    %512 = vmatpush1.xpose.msra.mxu0 0.0
    %513 = vmatprep.subr.mxu0 0.0
    %514 = vmatpush1.xpose.msra.mxu0 0.0
    %515 = vmatprep.subr.mxu0 0.0
    %516 = vmatpush1.xpose.msra.mxu0 0.0
    %517 = vmatprep.subr.mxu0 0.0
    %518 = vmatpush1.xpose.msra.mxu0 0.0
    %519 = vmatprep.subr.mxu0 0.0
    %520 = vmatpush1.xpose.msra.mxu0 0.0
    %521 = vmatprep.subr.mxu0 0.0
    %522 = vmatpush1.xpose.msra.mxu0 0.0
    %523 = vmatprep.subr.mxu0 0.0
    %524 = vmatpush1.xpose.msra.mxu0 0.0
    %525 = vmatprep.subr.mxu0 0.0
    %526 = vmatpush1.xpose.msra.mxu0 0.0
    %527 = vmatprep.subr.mxu0 0.0
    %528 = vmatpush1.xpose.msra.mxu0 0.0
    %529 = vmatprep.subr.mxu0 0.0
    %530 = vmatpush1.xpose.msra.mxu0 0.0
    %531 = vmatprep.subr.mxu0 0.0
    %532 = vmatpush1.xpose.msra.mxu0 0.0
    %533 = vmatprep.subr.mxu0 0.0
    %534 = vmatpush1.xpose.msra.mxu0 0.0
    %535 = vmatprep.subr.mxu0 0.0
    %536 = vmatpush1.xpose.msra.mxu0 0.0
    %537 = vmatprep.subr.mxu0 0.0
    %538 = vmatpush1.xpose.msra.mxu0 0.0
    %539 = vmatprep.subr.mxu0 0.0
    %540 = vmatpush1.xpose.msra.mxu0 0.0
    %541 = vmatprep.subr.mxu0 0.0
    %542 = vmatpush1.xpose.msra.mxu0 0.0
    %543 = vmatprep.subr.mxu0 0.0
    %544 = vmatpush1.xpose.msra.mxu0 0.0
    %545 = vmatprep.subr.mxu0 0.0
    %546 = vmatpush1.xpose.msra.mxu0 0.0
    %547 = vmatprep.subr.mxu0 0.0
    %548 = vmatpush1.xpose.msra.mxu0 0.0
    %549 = vmatprep.subr.mxu0 0.0
    %550 = vmatpush1.xpose.msra.mxu0 0.0
    %551 = vmatprep.subr.mxu0 0.0
    %552 = vmatpush1.xpose.msra.mxu0 0.0
    %553 = vmatprep.subr.mxu0 0.0
    %554 = vmatpush1.xpose.msra.mxu0 0.0
    %555 = vmatprep.subr.mxu0 0.0
    %556 = vmatpush1.xpose.msra.mxu0 0.0
    %557 = vmatprep.subr.mxu0 0.0
    %558 = vmatpush1.xpose.msra.mxu0 0.0
    %559 = vmatprep.subr.mxu0 0.0
    %560 = vmatpush1.xpose.msra.mxu0 0.0
    %561 = vmatprep.mubr.f32.mxu0 %v490
    %562 = vmatmul.mubr.f32.gmra.mrb[0].mxu0 %v489
    %v563 = vpop.f32.mrb[0].mxu0
    %v564 = vadd.f32 0.0, %v563
    %v565 = vpop.f32.mrb[0].mxu0
    %566 = vmatprep.mubr.f32.mxu0 %v494
    %567 = vmatmul.mubr.f32.gmra.mrb[0].mxu0 %v493
    %v568 = vpop.f32.mrb[0].mxu0
    %v569 = vadd.f32 0.0, %v568
    %v570 = vpop.f32.mrb[0].mxu0
    %571 = vdwg.mxu0
    %572 = vmatprep.subr.mxu0 %v332
    %573 = vmatpush1.xpose.msra.mxu0 %v330
    %574 = vmatprep.subr.mxu0 0.0
    %575 = vmatpush1.xpose.msra.mxu0 0.0
    %576 = vmatprep.subr.mxu0 0.0
    %577 = vmatpush1.xpose.msra.mxu0 0.0
    %578 = vmatprep.subr.mxu0 0.0
    %579 = vmatpush1.xpose.msra.mxu0 0.0
    %580 = vmatprep.subr.mxu0 0.0
    %581 = vmatpush1.xpose.msra.mxu0 0.0
    %582 = vmatprep.subr.mxu0 0.0
    %583 = vmatpush1.xpose.msra.mxu0 0.0
    %584 = vmatprep.subr.mxu0 0.0
    %585 = vmatpush1.xpose.msra.mxu0 0.0
    %586 = vmatprep.subr.mxu0 0.0
    %587 = vmatpush1.xpose.msra.mxu0 0.0
    %588 = vmatprep.subr.mxu0 0.0
    %589 = vmatpush1.xpose.msra.mxu0 0.0
    %590 = vmatprep.subr.mxu0 0.0
    %591 = vmatpush1.xpose.msra.mxu0 0.0
    %592 = vmatprep.subr.mxu0 0.0
    %593 = vmatpush1.xpose.msra.mxu0 0.0
    %594 = vmatprep.subr.mxu0 0.0
    %595 = vmatpush1.xpose.msra.mxu0 0.0
    %596 = vmatprep.subr.mxu0 0.0
    %597 = vmatpush1.xpose.msra.mxu0 0.0
    %598 = vmatprep.subr.mxu0 0.0
    %599 = vmatpush1.xpose.msra.mxu0 0.0
    %600 = vmatprep.subr.mxu0 0.0
    %601 = vmatpush1.xpose.msra.mxu0 0.0
    %602 = vmatprep.subr.mxu0 0.0
    %603 = vmatpush1.xpose.msra.mxu0 0.0
    %604 = vmatprep.subr.mxu0 0.0
    %605 = vmatpush1.xpose.msra.mxu0 0.0
    %606 = vmatprep.subr.mxu0 0.0
    %607 = vmatpush1.xpose.msra.mxu0 0.0
    %608 = vmatprep.subr.mxu0 0.0
    %609 = vmatpush1.xpose.msra.mxu0 0.0
    %610 = vmatprep.subr.mxu0 0.0
    %611 = vmatpush1.xpose.msra.mxu0 0.0
    %612 = vmatprep.subr.mxu0 0.0
    %613 = vmatpush1.xpose.msra.mxu0 0.0
    %614 = vmatprep.subr.mxu0 0.0
    %615 = vmatpush1.xpose.msra.mxu0 0.0
    %616 = vmatprep.subr.mxu0 0.0
    %617 = vmatpush1.xpose.msra.mxu0 0.0
    %618 = vmatprep.subr.mxu0 0.0
    %619 = vmatpush1.xpose.msra.mxu0 0.0
    %620 = vmatprep.subr.mxu0 0.0
    %621 = vmatpush1.xpose.msra.mxu0 0.0
    %622 = vmatprep.subr.mxu0 0.0
    %623 = vmatpush1.xpose.msra.mxu0 0.0
    %624 = vmatprep.subr.mxu0 0.0
    %625 = vmatpush1.xpose.msra.mxu0 0.0
    %626 = vmatprep.subr.mxu0 0.0
    %627 = vmatpush1.xpose.msra.mxu0 0.0
    %628 = vmatprep.subr.mxu0 0.0
    %629 = vmatpush1.xpose.msra.mxu0 0.0
    %630 = vmatprep.subr.mxu0 0.0
    %631 = vmatpush1.xpose.msra.mxu0 0.0
    %632 = vmatprep.subr.mxu0 0.0
    %633 = vmatpush1.xpose.msra.mxu0 0.0
    %634 = vmatprep.subr.mxu0 0.0
    %635 = vmatpush1.xpose.msra.mxu0 0.0
    %636 = vmatprep.mubr.f32.mxu0 %v492
    %637 = vmatmul.mubr.f32.gmra.mrb[0].mxu0 %v491
    %v638 = vpop.f32.mrb[0].mxu0
    %v639 = vadd.f32 %v564, %v638
    %v640 = vpop.f32.mrb[0].mxu0
    %641 = vmatprep.mubr.f32.mxu0 %v496
    %642 = vmatmul.mubr.f32.gmra.mrb[0].mxu0 %v495
    %v643 = vpop.f32.mrb[0].mxu0
    %v644 = vadd.f32 %v569, %v643
    %v645 = vpop.f32.mrb[0].mxu0
    %646 = vdwg.mxu0
    %v647 = vmul.f32 %v639, 0.00390625
    %v648 = vmul.f32 %v644, 0.00390625
    %v649 = vmul.f32 %v487, %v487
    %v650 = vmul.f32 %v488, %v488
    %v651 = vsub.f32 %v647, %v649
    %v652 = vsub.f32 %v648, %v650
    %v653 = vadd.f32 %v651, 1e-05
    %v654 = vadd.f32 %v652, 1e-05
    %v655 = vrsqrt.pop %v653
    %v656 = vrsqrt.pop %v654
    %vm657 = vcmask 15360
    %v659 = vsel %vm657, %v655, 0
    %v662 = vsel %vm657, %v656, 0
    %vm664 = vcmask 1041408
    %v665 = vsel %vm664, %v323, 0
    %v667 = vsel %vm664, %v331, 0
    %v669 = vsel %vm664, %v330, 0
    %v671 = vsel %vm664, %v332, 0
    %673 = vmatprep.subr.mxu0 %v667
    %674 = vmatpush1.msra.mxu0 %v665
    %675 = vmatprep.subr.mxu0 0.0
    %676 = vmatpush1.msra.mxu0 0.0
    %677 = vmatprep.subr.mxu0 0.0
    %678 = vmatpush1.msra.mxu0 0.0
    %679 = vmatprep.subr.mxu0 0.0
    %680 = vmatpush1.msra.mxu0 0.0
    %681 = vmatprep.subr.mxu0 0.0
    %682 = vmatpush1.msra.mxu0 0.0
    %683 = vmatprep.subr.mxu0 0.0
    %684 = vmatpush1.msra.mxu0 0.0
    %685 = vmatprep.subr.mxu0 0.0
    %686 = vmatpush1.msra.mxu0 0.0
    %687 = vmatprep.subr.mxu0 0.0
    %688 = vmatpush1.msra.mxu0 0.0
    %689 = vmatprep.subr.mxu0 0.0
    %690 = vmatpush1.msra.mxu0 0.0
    %691 = vmatprep.subr.mxu0 0.0
    %692 = vmatpush1.msra.mxu0 0.0
    %693 = vmatprep.subr.mxu0 0.0
    %694 = vmatpush1.msra.mxu0 0.0
    %695 = vmatprep.subr.mxu0 0.0
    %696 = vmatpush1.msra.mxu0 0.0
    %697 = vmatprep.subr.mxu0 0.0
    %698 = vmatpush1.msra.mxu0 0.0
    %699 = vmatprep.subr.mxu0 0.0
    %700 = vmatpush1.msra.mxu0 0.0
    %701 = vmatprep.subr.mxu0 0.0
    %702 = vmatpush1.msra.mxu0 0.0
    %703 = vmatprep.subr.mxu0 0.0
    %704 = vmatpush1.msra.mxu0 0.0
    %705 = vmatprep.subr.mxu0 0.0
    %706 = vmatpush1.msra.mxu0 0.0
    %707 = vmatprep.subr.mxu0 0.0
    %708 = vmatpush1.msra.mxu0 0.0
    %709 = vmatprep.subr.mxu0 0.0
    %710 = vmatpush1.msra.mxu0 0.0
    %711 = vmatprep.subr.mxu0 0.0
    %712 = vmatpush1.msra.mxu0 0.0
    %713 = vmatprep.subr.mxu0 0.0
    %714 = vmatpush1.msra.mxu0 0.0
    %715 = vmatprep.subr.mxu0 0.0
    %716 = vmatpush1.msra.mxu0 0.0
    %717 = vmatprep.subr.mxu0 0.0
    %718 = vmatpush1.msra.mxu0 0.0
    %719 = vmatprep.subr.mxu0 0.0
    %720 = vmatpush1.msra.mxu0 0.0
    %721 = vmatprep.subr.mxu0 0.0
    %722 = vmatpush1.msra.mxu0 0.0
    %723 = vmatprep.subr.mxu0 0.0
    %724 = vmatpush1.msra.mxu0 0.0
    %725 = vmatprep.subr.mxu0 0.0
    %726 = vmatpush1.msra.mxu0 0.0
    %727 = vmatprep.subr.mxu0 0.0
    %728 = vmatpush1.msra.mxu0 0.0
    %729 = vmatprep.subr.mxu0 0.0
    %730 = vmatpush1.msra.mxu0 0.0
    %731 = vmatprep.subr.mxu0 0.0
    %732 = vmatpush1.msra.mxu0 0.0
    %733 = vmatprep.subr.mxu0 0.0
    %734 = vmatpush1.msra.mxu0 0.0
    %735 = vmatprep.subr.mxu0 0.0
    %736 = vmatpush1.msra.mxu0 0.0
    %737 = vmatprep.mubr.f32.mxu0 0.0
    %738 = vmatmul.mubr.f32.gmra.mrb[0].mxu0 %v659
    %v739 = vpop.f32.mrb[0].mxu0
    %v740 = vadd.f32 0.0, %v739
    %v741 = vpop.f32.mrb[0].mxu0
    %v742 = vadd.f32 0.0, %v741
    %743 = vmatprep.mubr.f32.mxu0 0.0
    %744 = vmatmul.mubr.f32.gmra.mrb[0].mxu0 %v662
    %v745 = vpop.f32.mrb[0].mxu0
    %v746 = vadd.f32 0.0, %v745
    %v747 = vpop.f32.mrb[0].mxu0
    %v748 = vadd.f32 0.0, %v747
    %749 = vdwg.mxu0
    %750 = vmatprep.subr.mxu0 %v671
    %751 = vmatpush1.msra.mxu0 %v669
    %752 = vmatprep.subr.mxu0 0.0
    %753 = vmatpush1.msra.mxu0 0.0
    %754 = vmatprep.subr.mxu0 0.0
    %755 = vmatpush1.msra.mxu0 0.0
    %756 = vmatprep.subr.mxu0 0.0
    %757 = vmatpush1.msra.mxu0 0.0
    %758 = vmatprep.subr.mxu0 0.0
    %759 = vmatpush1.msra.mxu0 0.0
    %760 = vmatprep.subr.mxu0 0.0
    %761 = vmatpush1.msra.mxu0 0.0
    %762 = vmatprep.subr.mxu0 0.0
    %763 = vmatpush1.msra.mxu0 0.0
    %764 = vmatprep.subr.mxu0 0.0
    %765 = vmatpush1.msra.mxu0 0.0
    %766 = vmatprep.subr.mxu0 0.0
    %767 = vmatpush1.msra.mxu0 0.0
    %768 = vmatprep.subr.mxu0 0.0
    %769 = vmatpush1.msra.mxu0 0.0
    %770 = vmatprep.subr.mxu0 0.0
    %771 = vmatpush1.msra.mxu0 0.0
    %772 = vmatprep.subr.mxu0 0.0
    %773 = vmatpush1.msra.mxu0 0.0
    %774 = vmatprep.subr.mxu0 0.0
    %775 = vmatpush1.msra.mxu0 0.0
    %776 = vmatprep.subr.mxu0 0.0
    %777 = vmatpush1.msra.mxu0 0.0
    %778 = vmatprep.subr.mxu0 0.0
    %779 = vmatpush1.msra.mxu0 0.0
    %780 = vmatprep.subr.mxu0 0.0
    %781 = vmatpush1.msra.mxu0 0.0
    %782 = vmatprep.subr.mxu0 0.0
    %783 = vmatpush1.msra.mxu0 0.0
    %784 = vmatprep.subr.mxu0 0.0
    %785 = vmatpush1.msra.mxu0 0.0
    %786 = vmatprep.subr.mxu0 0.0
    %787 = vmatpush1.msra.mxu0 0.0
    %788 = vmatprep.subr.mxu0 0.0
    %789 = vmatpush1.msra.mxu0 0.0
    %790 = vmatprep.subr.mxu0 0.0
    %791 = vmatpush1.msra.mxu0 0.0
    %792 = vmatprep.subr.mxu0 0.0
    %793 = vmatpush1.msra.mxu0 0.0
    %794 = vmatprep.subr.mxu0 0.0
    %795 = vmatpush1.msra.mxu0 0.0
    %796 = vmatprep.subr.mxu0 0.0
    %797 = vmatpush1.msra.mxu0 0.0
    %798 = vmatprep.subr.mxu0 0.0
    %799 = vmatpush1.msra.mxu0 0.0
    %800 = vmatprep.subr.mxu0 0.0
    %801 = vmatpush1.msra.mxu0 0.0
    %802 = vmatprep.subr.mxu0 0.0
    %803 = vmatpush1.msra.mxu0 0.0
    %804 = vmatprep.subr.mxu0 0.0
    %805 = vmatpush1.msra.mxu0 0.0
    %806 = vmatprep.subr.mxu0 0.0
    %807 = vmatpush1.msra.mxu0 0.0
    %808 = vmatprep.subr.mxu0 0.0
    %809 = vmatpush1.msra.mxu0 0.0
    %810 = vmatprep.subr.mxu0 0.0
    %811 = vmatpush1.msra.mxu0 0.0
    %812 = vmatprep.subr.mxu0 0.0
    %813 = vmatpush1.msra.mxu0 0.0
    %814 = vmatprep.mubr.f32.mxu0 0.0
    %815 = vmatmul.mubr.f32.gmra.mrb[0].mxu0 %v659
    %v816 = vpop.f32.mrb[0].mxu0
    %v817 = vadd.f32 0.0, %v816
    %v818 = vpop.f32.mrb[0].mxu0
    %v819 = vadd.f32 0.0, %v818
    %820 = vmatprep.mubr.f32.mxu0 0.0
    %821 = vmatmul.mubr.f32.gmra.mrb[0].mxu0 %v662
    %v822 = vpop.f32.mrb[0].mxu0
    %v823 = vadd.f32 0.0, %v822
    %v824 = vpop.f32.mrb[0].mxu0
    %v825 = vadd.f32 0.0, %v824
    %826 = vdwg.mxu0
    %v827 = vmul.f32 %v487, %v655
    %v828 = vmul.f32 %v488, %v656
    %v830 = vsel %vm657, %v827, 0
    %v833 = vsel %vm657, %v828, 0
    %835 = vmatprep.subr.mxu0 %v667
    %836 = vmatpush1.msra.mxu0 %v665
    %837 = vmatprep.subr.mxu0 0.0
    %838 = vmatpush1.msra.mxu0 0.0
    %839 = vmatprep.subr.mxu0 0.0
    %840 = vmatpush1.msra.mxu0 0.0
    %841 = vmatprep.subr.mxu0 0.0
    %842 = vmatpush1.msra.mxu0 0.0
    %843 = vmatprep.subr.mxu0 0.0
    %844 = vmatpush1.msra.mxu0 0.0
    %845 = vmatprep.subr.mxu0 0.0
    %846 = vmatpush1.msra.mxu0 0.0
    %847 = vmatprep.subr.mxu0 0.0
    %848 = vmatpush1.msra.mxu0 0.0
    %849 = vmatprep.subr.mxu0 0.0
    %850 = vmatpush1.msra.mxu0 0.0
    %851 = vmatprep.subr.mxu0 0.0
    %852 = vmatpush1.msra.mxu0 0.0
    %853 = vmatprep.subr.mxu0 0.0
    %854 = vmatpush1.msra.mxu0 0.0
    %855 = vmatprep.subr.mxu0 0.0
    %856 = vmatpush1.msra.mxu0 0.0
    %857 = vmatprep.subr.mxu0 0.0
    %858 = vmatpush1.msra.mxu0 0.0
    %859 = vmatprep.subr.mxu0 0.0
    %860 = vmatpush1.msra.mxu0 0.0
    %861 = vmatprep.subr.mxu0 0.0
    %862 = vmatpush1.msra.mxu0 0.0
    %863 = vmatprep.subr.mxu0 0.0
    %864 = vmatpush1.msra.mxu0 0.0
    %865 = vmatprep.subr.mxu0 0.0
    %866 = vmatpush1.msra.mxu0 0.0
    %867 = vmatprep.subr.mxu0 0.0
    %868 = vmatpush1.msra.mxu0 0.0
    %869 = vmatprep.subr.mxu0 0.0
    %870 = vmatpush1.msra.mxu0 0.0
    %871 = vmatprep.subr.mxu0 0.0
    %872 = vmatpush1.msra.mxu0 0.0
    %873 = vmatprep.subr.mxu0 0.0
    %874 = vmatpush1.msra.mxu0 0.0
    %875 = vmatprep.subr.mxu0 0.0
    %876 = vmatpush1.msra.mxu0 0.0
    %877 = vmatprep.subr.mxu0 0.0
    %878 = vmatpush1.msra.mxu0 0.0
    %879 = vmatprep.subr.mxu0 0.0
    %880 = vmatpush1.msra.mxu0 0.0
    %881 = vmatprep.subr.mxu0 0.0
    %882 = vmatpush1.msra.mxu0 0.0
    %883 = vmatprep.subr.mxu0 0.0
    %884 = vmatpush1.msra.mxu0 0.0
    %885 = vmatprep.subr.mxu0 0.0
    %886 = vmatpush1.msra.mxu0 0.0
    %887 = vmatprep.subr.mxu0 0.0
    %888 = vmatpush1.msra.mxu0 0.0
    %889 = vmatprep.subr.mxu0 0.0
    %890 = vmatpush1.msra.mxu0 0.0
    %891 = vmatprep.subr.mxu0 0.0
    %892 = vmatpush1.msra.mxu0 0.0
    %893 = vmatprep.subr.mxu0 0.0
    %894 = vmatpush1.msra.mxu0 0.0
    %895 = vmatprep.subr.mxu0 0.0
    %896 = vmatpush1.msra.mxu0 0.0
    %897 = vmatprep.subr.mxu0 0.0
    %898 = vmatpush1.msra.mxu0 0.0
    %899 = vmatprep.mubr.f32.mxu0 0.0
    %900 = vmatmul.mubr.f32.gmra.mrb[0].mxu0 %v830
    %v901 = vpop.f32.mrb[0].mxu0
    %v902 = vadd.f32 0.0, %v901
    %v903 = vpop.f32.mrb[0].mxu0
    %v904 = vadd.f32 0.0, %v903
    %905 = vmatprep.mubr.f32.mxu0 0.0
    %906 = vmatmul.mubr.f32.gmra.mrb[0].mxu0 %v833
    %v907 = vpop.f32.mrb[0].mxu0
    %v908 = vadd.f32 0.0, %v907
    %v909 = vpop.f32.mrb[0].mxu0
    %v910 = vadd.f32 0.0, %v909
    %911 = vdwg.mxu0
    %912 = vmatprep.subr.mxu0 %v671
    %913 = vmatpush1.msra.mxu0 %v669
    %914 = vmatprep.subr.mxu0 0.0
    %915 = vmatpush1.msra.mxu0 0.0
    %916 = vmatprep.subr.mxu0 0.0
    %917 = vmatpush1.msra.mxu0 0.0
    %918 = vmatprep.subr.mxu0 0.0
    %919 = vmatpush1.msra.mxu0 0.0
    %920 = vmatprep.subr.mxu0 0.0
    %921 = vmatpush1.msra.mxu0 0.0
    %922 = vmatprep.subr.mxu0 0.0
    %923 = vmatpush1.msra.mxu0 0.0
    %924 = vmatprep.subr.mxu0 0.0
    %925 = vmatpush1.msra.mxu0 0.0
    %926 = vmatprep.subr.mxu0 0.0
    %927 = vmatpush1.msra.mxu0 0.0
    %928 = vmatprep.subr.mxu0 0.0
    %929 = vmatpush1.msra.mxu0 0.0
    %930 = vmatprep.subr.mxu0 0.0
    %931 = vmatpush1.msra.mxu0 0.0
    %932 = vmatprep.subr.mxu0 0.0
    %933 = vmatpush1.msra.mxu0 0.0
    %934 = vmatprep.subr.mxu0 0.0
    %935 = vmatpush1.msra.mxu0 0.0
    %936 = vmatprep.subr.mxu0 0.0
    %937 = vmatpush1.msra.mxu0 0.0
    %938 = vmatprep.subr.mxu0 0.0
    %939 = vmatpush1.msra.mxu0 0.0
    %940 = vmatprep.subr.mxu0 0.0
    %941 = vmatpush1.msra.mxu0 0.0
    %942 = vmatprep.subr.mxu0 0.0
    %943 = vmatpush1.msra.mxu0 0.0
    %944 = vmatprep.subr.mxu0 0.0
    %945 = vmatpush1.msra.mxu0 0.0
    %946 = vmatprep.subr.mxu0 0.0
    %947 = vmatpush1.msra.mxu0 0.0
    %948 = vmatprep.subr.mxu0 0.0
    %949 = vmatpush1.msra.mxu0 0.0
    %950 = vmatprep.subr.mxu0 0.0
    %951 = vmatpush1.msra.mxu0 0.0
    %952 = vmatprep.subr.mxu0 0.0
    %953 = vmatpush1.msra.mxu0 0.0
    %954 = vmatprep.subr.mxu0 0.0
    %955 = vmatpush1.msra.mxu0 0.0
    %956 = vmatprep.subr.mxu0 0.0
    %957 = vmatpush1.msra.mxu0 0.0
    %958 = vmatprep.subr.mxu0 0.0
    %959 = vmatpush1.msra.mxu0 0.0
    %960 = vmatprep.subr.mxu0 0.0
    %961 = vmatpush1.msra.mxu0 0.0
    %962 = vmatprep.subr.mxu0 0.0
    %963 = vmatpush1.msra.mxu0 0.0
    %964 = vmatprep.subr.mxu0 0.0
    %965 = vmatpush1.msra.mxu0 0.0
    %966 = vmatprep.subr.mxu0 0.0
    %967 = vmatpush1.msra.mxu0 0.0
    %968 = vmatprep.subr.mxu0 0.0
    %969 = vmatpush1.msra.mxu0 0.0
    %970 = vmatprep.subr.mxu0 0.0
    %971 = vmatpush1.msra.mxu0 0.0
    %972 = vmatprep.subr.mxu0 0.0
    %973 = vmatpush1.msra.mxu0 0.0
    %974 = vmatprep.subr.mxu0 0.0
    %975 = vmatpush1.msra.mxu0 0.0
    %976 = vmatprep.mubr.f32.mxu0 0.0
    %977 = vmatmul.mubr.f32.gmra.mrb[0].mxu0 %v830
    %v978 = vpop.f32.mrb[0].mxu0
    %v979 = vadd.f32 0.0, %v978
    %v980 = vpop.f32.mrb[0].mxu0
    %v981 = vadd.f32 0.0, %v980
    %982 = vmatprep.mubr.f32.mxu0 0.0
    %983 = vmatmul.mubr.f32.gmra.mrb[0].mxu0 %v833
    %v984 = vpop.f32.mrb[0].mxu0
    %v985 = vadd.f32 0.0, %v984
    %v986 = vpop.f32.mrb[0].mxu0
    %v987 = vadd.f32 0.0, %v986
    %988 = vdwg.mxu0
    %v989 = vmul.f32 %v227, %v740
    %v990 = vmul.f32 %v229, %v742
    %v991 = vmul.f32 %v304, %v817
    %v992 = vmul.f32 %v306, %v819
    %v993 = vmul.f32 %v233, %v746
    %v994 = vmul.f32 %v235, %v748
    %v995 = vmul.f32 %v310, %v823
    %v996 = vmul.f32 %v312, %v825
    %v997 = vsub.f32 %v989, %v902
    %v998 = vsub.f32 %v990, %v904
    %v999 = vsub.f32 %v991, %v979
    %v1000 = vsub.f32 %v992, %v981
    %v1001 = vsub.f32 %v993, %v908
    %v1002 = vsub.f32 %v994, %v910
    %v1003 = vsub.f32 %v995, %v985
    %v1004 = vsub.f32 %v996, %v987
    %v1005 = vmax.f32 %v997, 0.0
    %v1006 = vmax.f32 %v998, 0.0
    %v1007 = vmax.f32 %v999, 0.0
    %v1008 = vmax.f32 %v1000, 0.0
    %v1009 = vmax.f32 %v1001, 0.0
    %v1010 = vmax.f32 %v1002, 0.0
    %v1011 = vmax.f32 %v1003, 0.0
    %v1012 = vmax.f32 %v1004, 0.0
    %1013 = vrot.lane.b32.xlu0 %v1005, 17
    %v1014 = vpop.permute.xlu0 %1013
    %1015 = vrot.lane.b32.xlu0 %v1009, 17
    %v1016 = vpop.permute.xlu0 %1015
    %1017 = vrot.lane.b32.xlu0 %v1006, 17
    %v1018 = vpop.permute.xlu0 %1017
    %1019 = vrot.lane.b32.xlu0 %v1010, 17
    %v1020 = vpop.permute.xlu0 %1019
    %1021 = vrot.lane.b32.xlu0 %v1007, 17
    %v1022 = vpop.permute.xlu0 %1021
    %1023 = vrot.lane.b32.xlu0 %v1011, 17
    %v1024 = vpop.permute.xlu0 %1023
    %1025 = vrot.lane.b32.xlu0 %v1008, 17
    %v1026 = vpop.permute.xlu0 %1025
    %1027 = vrot.lane.b32.xlu0 %v1012, 17
    %v1028 = vpop.permute.xlu0 %1027
    %v1029 = vlaneseq
    %v1030 = vand.u32 %v1029, 127
    %vm1031 = vcmp.lt.s32.totalorder %v1030, 17
    %v1032 = vsel %vm1031, %v1022, %v1026
    %v1033 = vsel %vm1031, %v1024, %v1028
    %v1034 = vsel %vm1031, %v1018, %v1022
    %v1035 = vsel %vm1031, %v1020, %v1024
    %v1036 = vsel %vm1031, %v1014, %v1018
    %v1037 = vsel %vm1031, %v1016, %v1020
    %v1038 = vsel %vm1031, %v1026, %v1014
    %v1039 = vsel %vm1031, %v1028, %v1016
    %v1040 = vlaneseq
    %v1041 = vshrl.u32 %v1040, 7
    %v1042 = vsub.s32 0, %v1041
    %v1043 = vrot.slane %v40, %v1042
    %v1044 = vlaneseq
    %v1045 = vshrl.u32 %v1044, 7
    %v1046 = vsub.s32 0, %v1045
    %v1047 = vrot.slane %v41, %v1046
    %v1048 = vlaneseq
    %v1049 = vshrl.u32 %v1048, 7
    %v1050 = vsub.s32 0, %v1049
    %v1051 = vrot.slane %v42, %v1050
    %v1052 = vlaneseq
    %v1053 = vshrl.u32 %v1052, 7
    %v1054 = vsub.s32 0, %v1053
    %v1055 = vrot.slane %v43, %v1054
    %v1056 = vmul.f32 %v1038, %v1043
    %v1057 = vmul.f32 %v1036, %v1047
    %v1058 = vmul.f32 %v1034, %v1051
    %v1059 = vmul.f32 %v1032, %v1055
    %v1060 = vmul.f32 %v1039, %v1043
    %v1061 = vmul.f32 %v1037, %v1047
    %v1062 = vmul.f32 %v1035, %v1051
    %v1063 = vmul.f32 %v1033, %v1055
    %1064 = vst [vmem:[#allocation3] sm:$0xff] %v1056
    %1065 = vst [vmem:[#allocation3 + $0x8] sm:$0xff] %v1057
    %1066 = vst [vmem:[#allocation3 + $0x10] sm:$0xff] %v1058
    %1067 = vst [vmem:[#allocation3 + $0x18] sm:$0xff] %v1059
    %1068 = vst [vmem:[#allocation3 + $0x20] sm:$0xff] %v1060
    %1069 = vst [vmem:[#allocation3 + $0x28] sm:$0xff] %v1061
    %1070 = vst [vmem:[#allocation3 + $0x30] sm:$0xff] %v1062
    %1071 = vst [vmem:[#allocation3 + $0x38] sm:$0xff] %v1063
    %1072 = vrot.lane.b32.xlu0 %v1005, 16
    %v1073 = vpop.permute.xlu0 %1072
    %1074 = vrot.lane.b32.xlu0 %v1009, 16
    %v1075 = vpop.permute.xlu0 %1074
    %1076 = vrot.lane.b32.xlu0 %v1006, 16
    %v1077 = vpop.permute.xlu0 %1076
    %1078 = vrot.lane.b32.xlu0 %v1010, 16
    %v1079 = vpop.permute.xlu0 %1078
    %1080 = vrot.lane.b32.xlu0 %v1007, 16
    %v1081 = vpop.permute.xlu0 %1080
    %1082 = vrot.lane.b32.xlu0 %v1011, 16
    %v1083 = vpop.permute.xlu0 %1082
    %1084 = vrot.lane.b32.xlu0 %v1008, 16
    %v1085 = vpop.permute.xlu0 %1084
    %1086 = vrot.lane.b32.xlu0 %v1012, 16
    %v1087 = vpop.permute.xlu0 %1086
    %vm1088 = vcmp.lt.s32.totalorder %v1030, 16
    %v1089 = vsel %vm1088, %v1081, %v1085
    %v1090 = vsel %vm1088, %v1083, %v1087
    %v1091 = vsel %vm1088, %v1077, %v1081
    %v1092 = vsel %vm1088, %v1079, %v1083
    %v1093 = vsel %vm1088, %v1073, %v1077
    %v1094 = vsel %vm1088, %v1075, %v1079
    %v1095 = vsel %vm1088, %v1085, %v1073
    %v1096 = vsel %vm1088, %v1087, %v1075
    %v1097 = vlaneseq
    %v1098 = vshrl.u32 %v1097, 7
    %v1099 = vsub.s32 1, %v1098
    %v1100 = vrot.slane %v40, %v1099
    %v1101 = vlaneseq
    %v1102 = vshrl.u32 %v1101, 7
    %v1103 = vsub.s32 1, %v1102
    %v1104 = vrot.slane %v41, %v1103
    %v1105 = vlaneseq
    %v1106 = vshrl.u32 %v1105, 7
    %v1107 = vsub.s32 1, %v1106
    %v1108 = vrot.slane %v42, %v1107
    %v1109 = vlaneseq
    %v1110 = vshrl.u32 %v1109, 7
    %v1111 = vsub.s32 1, %v1110
    %v1112 = vrot.slane %v43, %v1111
    %v1113 = vmul.f32 %v1095, %v1100
    %v1114 = vmul.f32 %v1093, %v1104
    %v1115 = vmul.f32 %v1091, %v1108
    %v1116 = vmul.f32 %v1089, %v1112
    %v1117 = vmul.f32 %v1096, %v1100
    %v1118 = vmul.f32 %v1094, %v1104
    %v1119 = vmul.f32 %v1092, %v1108
    %v1120 = vmul.f32 %v1090, %v1112
    %1121 = vst [vmem:[#allocation3 + $0x40] sm:$0xff] %v1113
    %1122 = vst [vmem:[#allocation3 + $0x48] sm:$0xff] %v1114
    %1123 = vst [vmem:[#allocation3 + $0x50] sm:$0xff] %v1115
    %1124 = vst [vmem:[#allocation3 + $0x58] sm:$0xff] %v1116
    %1125 = vst [vmem:[#allocation3 + $0x60] sm:$0xff] %v1117
    %1126 = vst [vmem:[#allocation3 + $0x68] sm:$0xff] %v1118
    %1127 = vst [vmem:[#allocation3 + $0x70] sm:$0xff] %v1119
    %1128 = vst [vmem:[#allocation3 + $0x78] sm:$0xff] %v1120
    %1129 = vrot.lane.b32.xlu0 %v1005, 15
    %v1130 = vpop.permute.xlu0 %1129
    %1131 = vrot.lane.b32.xlu0 %v1009, 15
    %v1132 = vpop.permute.xlu0 %1131
    %1133 = vrot.lane.b32.xlu0 %v1006, 15
    %v1134 = vpop.permute.xlu0 %1133
    %1135 = vrot.lane.b32.xlu0 %v1010, 15
    %v1136 = vpop.permute.xlu0 %1135
    %1137 = vrot.lane.b32.xlu0 %v1007, 15
    %v1138 = vpop.permute.xlu0 %1137
    %1139 = vrot.lane.b32.xlu0 %v1011, 15
    %v1140 = vpop.permute.xlu0 %1139
    %1141 = vrot.lane.b32.xlu0 %v1008, 15
    %v1142 = vpop.permute.xlu0 %1141
    %1143 = vrot.lane.b32.xlu0 %v1012, 15
    %v1144 = vpop.permute.xlu0 %1143
    %vm1145 = vcmp.lt.s32.totalorder %v1030, 15
    %v1146 = vsel %vm1145, %v1138, %v1142
    %v1147 = vsel %vm1145, %v1140, %v1144
    %v1148 = vsel %vm1145, %v1134, %v1138
    %v1149 = vsel %vm1145, %v1136, %v1140
    %v1150 = vsel %vm1145, %v1130, %v1134
    %v1151 = vsel %vm1145, %v1132, %v1136
    %v1152 = vsel %vm1145, %v1142, %v1130
    %v1153 = vsel %vm1145, %v1144, %v1132
    %v1154 = vlaneseq
    %v1155 = vshrl.u32 %v1154, 7
    %v1156 = vsub.s32 2, %v1155
    %v1157 = vrot.slane %v40, %v1156
    %v1158 = vlaneseq
    %v1159 = vshrl.u32 %v1158, 7
    %v1160 = vsub.s32 2, %v1159
    %v1161 = vrot.slane %v41, %v1160
    %v1162 = vlaneseq
    %v1163 = vshrl.u32 %v1162, 7
    %v1164 = vsub.s32 2, %v1163
    %v1165 = vrot.slane %v42, %v1164
    %v1166 = vlaneseq
    %v1167 = vshrl.u32 %v1166, 7
    %v1168 = vsub.s32 2, %v1167
    %v1169 = vrot.slane %v43, %v1168
    %v1170 = vmul.f32 %v1152, %v1157
    %v1171 = vmul.f32 %v1150, %v1161
    %v1172 = vmul.f32 %v1148, %v1165
    %v1173 = vmul.f32 %v1146, %v1169
    %v1174 = vmul.f32 %v1153, %v1157
    %v1175 = vmul.f32 %v1151, %v1161
    %v1176 = vmul.f32 %v1149, %v1165
    %v1177 = vmul.f32 %v1147, %v1169
    %1178 = vst [vmem:[#allocation3 + $0x80] sm:$0xff] %v1170
    %1179 = vst [vmem:[#allocation3 + $0x88] sm:$0xff] %v1171
    %1180 = vst [vmem:[#allocation3 + $0x90] sm:$0xff] %v1172
    %1181 = vst [vmem:[#allocation3 + $0x98] sm:$0xff] %v1173
    %1182 = vst [vmem:[#allocation3 + $0xa0] sm:$0xff] %v1174
    %1183 = vst [vmem:[#allocation3 + $0xa8] sm:$0xff] %v1175
    %1184 = vst [vmem:[#allocation3 + $0xb0] sm:$0xff] %v1176
    %1185 = vst [vmem:[#allocation3 + $0xb8] sm:$0xff] %v1177
    %1186 = vrot.lane.b32.xlu0 %v1005, 1
    %v1187 = vpop.permute.xlu0 %1186
    %1188 = vrot.lane.b32.xlu0 %v1009, 1
    %v1189 = vpop.permute.xlu0 %1188
    %1190 = vrot.lane.b32.xlu0 %v1006, 1
    %v1191 = vpop.permute.xlu0 %1190
    %1192 = vrot.lane.b32.xlu0 %v1010, 1
    %v1193 = vpop.permute.xlu0 %1192
    %1194 = vrot.lane.b32.xlu0 %v1007, 1
    %v1195 = vpop.permute.xlu0 %1194
    %1196 = vrot.lane.b32.xlu0 %v1011, 1
    %v1197 = vpop.permute.xlu0 %1196
    %1198 = vrot.lane.b32.xlu0 %v1008, 1
    %v1199 = vpop.permute.xlu0 %1198
    %1200 = vrot.lane.b32.xlu0 %v1012, 1
    %v1201 = vpop.permute.xlu0 %1200
    %vm1202 = vcmp.lt.s32.totalorder %v1030, 1
    %v1203 = vsel %vm1202, %v1195, %v1199
    %v1204 = vsel %vm1202, %v1197, %v1201
    %v1205 = vsel %vm1202, %v1191, %v1195
    %v1206 = vsel %vm1202, %v1193, %v1197
    %v1207 = vsel %vm1202, %v1187, %v1191
    %v1208 = vsel %vm1202, %v1189, %v1193
    %v1209 = vsel %vm1202, %v1199, %v1187
    %v1210 = vsel %vm1202, %v1201, %v1189
    %v1211 = vlaneseq
    %v1212 = vshrl.u32 %v1211, 7
    %v1213 = vsub.s32 3, %v1212
    %v1214 = vrot.slane %v40, %v1213
    %v1215 = vlaneseq
    %v1216 = vshrl.u32 %v1215, 7
    %v1217 = vsub.s32 3, %v1216
    %v1218 = vrot.slane %v41, %v1217
    %v1219 = vlaneseq
    %v1220 = vshrl.u32 %v1219, 7
    %v1221 = vsub.s32 3, %v1220
    %v1222 = vrot.slane %v42, %v1221
    %v1223 = vlaneseq
    %v1224 = vshrl.u32 %v1223, 7
    %v1225 = vsub.s32 3, %v1224
    %v1226 = vrot.slane %v43, %v1225
    %v1227 = vmul.f32 %v1209, %v1214
    %v1228 = vmul.f32 %v1207, %v1218
    %v1229 = vmul.f32 %v1205, %v1222
    %v1230 = vmul.f32 %v1203, %v1226
    %v1231 = vmul.f32 %v1210, %v1214
    %v1232 = vmul.f32 %v1208, %v1218
    %v1233 = vmul.f32 %v1206, %v1222
    %v1234 = vmul.f32 %v1204, %v1226
    %1235 = vst [vmem:[#allocation3 + $0xc0] sm:$0xff] %v1227
    %1236 = vst [vmem:[#allocation3 + $0xc8] sm:$0xff] %v1228
    %1237 = vst [vmem:[#allocation3 + $0xd0] sm:$0xff] %v1229
    %1238 = vst [vmem:[#allocation3 + $0xd8] sm:$0xff] %v1230
    %1239 = vst [vmem:[#allocation3 + $0xe0] sm:$0xff] %v1231
    %1240 = vst [vmem:[#allocation3 + $0xe8] sm:$0xff] %v1232
    %1241 = vst [vmem:[#allocation3 + $0xf0] sm:$0xff] %v1233
    %1242 = vst [vmem:[#allocation3 + $0xf8] sm:$0xff] %v1234
    %v1243 = vlaneseq
    %v1244 = vshrl.u32 %v1243, 7
    %v1245 = vsub.s32 4, %v1244
    %v1246 = vrot.slane %v40, %v1245
    %v1247 = vlaneseq
    %v1248 = vshrl.u32 %v1247, 7
    %v1249 = vsub.s32 4, %v1248
    %v1250 = vrot.slane %v41, %v1249
    %v1251 = vlaneseq
    %v1252 = vshrl.u32 %v1251, 7
    %v1253 = vsub.s32 4, %v1252
    %v1254 = vrot.slane %v42, %v1253
    %v1255 = vlaneseq
    %v1256 = vshrl.u32 %v1255, 7
    %v1257 = vsub.s32 4, %v1256
    %v1258 = vrot.slane %v43, %v1257
    %v1259 = vmul.f32 %v1005, %v1246
    %v1260 = vmul.f32 %v1006, %v1250
    %v1261 = vmul.f32 %v1007, %v1254
    %v1262 = vmul.f32 %v1008, %v1258
    %v1263 = vmul.f32 %v1009, %v1246
    %v1264 = vmul.f32 %v1010, %v1250
    %v1265 = vmul.f32 %v1011, %v1254
    %v1266 = vmul.f32 %v1012, %v1258
    %1267 = vst [vmem:[#allocation3 + $0x100] sm:$0xff] %v1259
    %1268 = vst [vmem:[#allocation3 + $0x108] sm:$0xff] %v1260
    %1269 = vst [vmem:[#allocation3 + $0x110] sm:$0xff] %v1261
    %1270 = vst [vmem:[#allocation3 + $0x118] sm:$0xff] %v1262
    %1271 = vst [vmem:[#allocation3 + $0x120] sm:$0xff] %v1263
    %1272 = vst [vmem:[#allocation3 + $0x128] sm:$0xff] %v1264
    %1273 = vst [vmem:[#allocation3 + $0x130] sm:$0xff] %v1265
    %1274 = vst [vmem:[#allocation3 + $0x138] sm:$0xff] %v1266
    %1275 = vrot.lane.b32.xlu0 %v1005, 127
    %v1276 = vpop.permute.xlu0 %1275
    %1277 = vrot.lane.b32.xlu0 %v1009, 127
    %v1278 = vpop.permute.xlu0 %1277
    %1279 = vrot.lane.b32.xlu0 %v1006, 127
    %v1280 = vpop.permute.xlu0 %1279
    %1281 = vrot.lane.b32.xlu0 %v1010, 127
    %v1282 = vpop.permute.xlu0 %1281
    %1283 = vrot.lane.b32.xlu0 %v1007, 127
    %v1284 = vpop.permute.xlu0 %1283
    %1285 = vrot.lane.b32.xlu0 %v1011, 127
    %v1286 = vpop.permute.xlu0 %1285
    %1287 = vrot.lane.b32.xlu0 %v1008, 127
    %v1288 = vpop.permute.xlu0 %1287
    %1289 = vrot.lane.b32.xlu0 %v1012, 127
    %v1290 = vpop.permute.xlu0 %1289
    %vm1291 = vcmp.lt.s32.totalorder %v1030, 127
    %v1292 = vsel %vm1291, %v1284, %v1288
    %v1293 = vsel %vm1291, %v1286, %v1290
    %v1294 = vsel %vm1291, %v1280, %v1284
    %v1295 = vsel %vm1291, %v1282, %v1286
    %v1296 = vsel %vm1291, %v1276, %v1280
    %v1297 = vsel %vm1291, %v1278, %v1282
    %v1298 = vsel %vm1291, %v1288, %v1276
    %v1299 = vsel %vm1291, %v1290, %v1278
    %v1300 = vlaneseq
    %v1301 = vshrl.u32 %v1300, 7
    %v1302 = vsub.s32 5, %v1301
    %v1303 = vrot.slane %v40, %v1302
    %v1304 = vlaneseq
    %v1305 = vshrl.u32 %v1304, 7
    %v1306 = vsub.s32 5, %v1305
    %v1307 = vrot.slane %v41, %v1306
    %v1308 = vlaneseq
    %v1309 = vshrl.u32 %v1308, 7
    %v1310 = vsub.s32 5, %v1309
    %v1311 = vrot.slane %v42, %v1310
    %v1312 = vlaneseq
    %v1313 = vshrl.u32 %v1312, 7
    %v1314 = vsub.s32 5, %v1313
    %v1315 = vrot.slane %v43, %v1314
    %v1316 = vmul.f32 %v1296, %v1303
    %v1317 = vmul.f32 %v1294, %v1307
    %v1318 = vmul.f32 %v1292, %v1311
    %v1319 = vmul.f32 %v1298, %v1315
    %v1320 = vmul.f32 %v1297, %v1303
    %v1321 = vmul.f32 %v1295, %v1307
    %v1322 = vmul.f32 %v1293, %v1311
    %v1323 = vmul.f32 %v1299, %v1315
    %1324 = vst [vmem:[#allocation3 + $0x140] sm:$0xff] %v1316
    %1325 = vst [vmem:[#allocation3 + $0x148] sm:$0xff] %v1317
    %1326 = vst [vmem:[#allocation3 + $0x150] sm:$0xff] %v1318
    %1327 = vst [vmem:[#allocation3 + $0x158] sm:$0xff] %v1319
    %1328 = vst [vmem:[#allocation3 + $0x160] sm:$0xff] %v1320
    %1329 = vst [vmem:[#allocation3 + $0x168] sm:$0xff] %v1321
    %1330 = vst [vmem:[#allocation3 + $0x170] sm:$0xff] %v1322
    %1331 = vst [vmem:[#allocation3 + $0x178] sm:$0xff] %v1323
    %1332 = vrot.lane.b32.xlu0 %v1005, 113
    %v1333 = vpop.permute.xlu0 %1332
    %1334 = vrot.lane.b32.xlu0 %v1009, 113
    %v1335 = vpop.permute.xlu0 %1334
    %1336 = vrot.lane.b32.xlu0 %v1006, 113
    %v1337 = vpop.permute.xlu0 %1336
    %1338 = vrot.lane.b32.xlu0 %v1010, 113
    %v1339 = vpop.permute.xlu0 %1338
    %1340 = vrot.lane.b32.xlu0 %v1007, 113
    %v1341 = vpop.permute.xlu0 %1340
    %1342 = vrot.lane.b32.xlu0 %v1011, 113
    %v1343 = vpop.permute.xlu0 %1342
    %1344 = vrot.lane.b32.xlu0 %v1008, 113
    %v1345 = vpop.permute.xlu0 %1344
    %1346 = vrot.lane.b32.xlu0 %v1012, 113
    %v1347 = vpop.permute.xlu0 %1346
    %vm1348 = vcmp.lt.s32.totalorder %v1030, 113
    %v1349 = vsel %vm1348, %v1341, %v1345
    %v1350 = vsel %vm1348, %v1343, %v1347
    %v1351 = vsel %vm1348, %v1337, %v1341
    %v1352 = vsel %vm1348, %v1339, %v1343
    %v1353 = vsel %vm1348, %v1333, %v1337
    %v1354 = vsel %vm1348, %v1335, %v1339
    %v1355 = vsel %vm1348, %v1345, %v1333
    %v1356 = vsel %vm1348, %v1347, %v1335
    %v1357 = vlaneseq
    %v1358 = vshrl.u32 %v1357, 7
    %v1359 = vsub.s32 6, %v1358
    %v1360 = vrot.slane %v40, %v1359
    %v1361 = vlaneseq
    %v1362 = vshrl.u32 %v1361, 7
    %v1363 = vsub.s32 6, %v1362
    %v1364 = vrot.slane %v41, %v1363
    %v1365 = vlaneseq
    %v1366 = vshrl.u32 %v1365, 7
    %v1367 = vsub.s32 6, %v1366
    %v1368 = vrot.slane %v42, %v1367
    %v1369 = vlaneseq
    %v1370 = vshrl.u32 %v1369, 7
    %v1371 = vsub.s32 6, %v1370
    %v1372 = vrot.slane %v43, %v1371
    %v1373 = vmul.f32 %v1353, %v1360
    %v1374 = vmul.f32 %v1351, %v1364
    %v1375 = vmul.f32 %v1349, %v1368
    %v1376 = vmul.f32 %v1355, %v1372
    %v1377 = vmul.f32 %v1354, %v1360
    %v1378 = vmul.f32 %v1352, %v1364
    %v1379 = vmul.f32 %v1350, %v1368
    %v1380 = vmul.f32 %v1356, %v1372
    %1381 = vst [vmem:[#allocation3 + $0x180] sm:$0xff] %v1373
    %1382 = vst [vmem:[#allocation3 + $0x188] sm:$0xff] %v1374
    %1383 = vst [vmem:[#allocation3 + $0x190] sm:$0xff] %v1375
    %1384 = vst [vmem:[#allocation3 + $0x198] sm:$0xff] %v1376
    %1385 = vst [vmem:[#allocation3 + $0x1a0] sm:$0xff] %v1377
    %1386 = vst [vmem:[#allocation3 + $0x1a8] sm:$0xff] %v1378
    %1387 = vst [vmem:[#allocation3 + $0x1b0] sm:$0xff] %v1379
    %1388 = vst [vmem:[#allocation3 + $0x1b8] sm:$0xff] %v1380
    %1389 = vrot.lane.b32.xlu0 %v1005, 112
    %v1390 = vpop.permute.xlu0 %1389
    %1391 = vrot.lane.b32.xlu0 %v1009, 112
    %v1392 = vpop.permute.xlu0 %1391
    %1393 = vrot.lane.b32.xlu0 %v1006, 112
    %v1394 = vpop.permute.xlu0 %1393
    %1395 = vrot.lane.b32.xlu0 %v1010, 112
    %v1396 = vpop.permute.xlu0 %1395
    %1397 = vrot.lane.b32.xlu0 %v1007, 112
    %v1398 = vpop.permute.xlu0 %1397
    %1399 = vrot.lane.b32.xlu0 %v1011, 112
    %v1400 = vpop.permute.xlu0 %1399
    %1401 = vrot.lane.b32.xlu0 %v1008, 112
    %v1402 = vpop.permute.xlu0 %1401
    %1403 = vrot.lane.b32.xlu0 %v1012, 112
    %v1404 = vpop.permute.xlu0 %1403
    %vm1405 = vcmp.lt.s32.totalorder %v1030, 112
    %v1406 = vsel %vm1405, %v1398, %v1402
    %v1407 = vsel %vm1405, %v1400, %v1404
    %v1408 = vsel %vm1405, %v1394, %v1398
    %v1409 = vsel %vm1405, %v1396, %v1400
    %v1410 = vsel %vm1405, %v1390, %v1394
    %v1411 = vsel %vm1405, %v1392, %v1396
    %v1412 = vsel %vm1405, %v1402, %v1390
    %v1413 = vsel %vm1405, %v1404, %v1392
    %v1414 = vlaneseq
    %v1415 = vshrl.u32 %v1414, 7
    %v1416 = vsub.s32 7, %v1415
    %v1417 = vrot.slane %v40, %v1416
    %v1418 = vlaneseq
    %v1419 = vshrl.u32 %v1418, 7
    %v1420 = vsub.s32 7, %v1419
    %v1421 = vrot.slane %v41, %v1420
    %v1422 = vlaneseq
    %v1423 = vshrl.u32 %v1422, 7
    %v1424 = vsub.s32 7, %v1423
    %v1425 = vrot.slane %v42, %v1424
    %v1426 = vlaneseq
    %v1427 = vshrl.u32 %v1426, 7
    %v1428 = vsub.s32 7, %v1427
    %v1429 = vrot.slane %v43, %v1428
    %v1430 = vmul.f32 %v1410, %v1417
    %v1431 = vmul.f32 %v1408, %v1421
    %v1432 = vmul.f32 %v1406, %v1425
    %v1433 = vmul.f32 %v1412, %v1429
    %v1434 = vmul.f32 %v1411, %v1417
    %v1435 = vmul.f32 %v1409, %v1421
    %v1436 = vmul.f32 %v1407, %v1425
    %v1437 = vmul.f32 %v1413, %v1429
    %1438 = vst [vmem:[#allocation3 + $0x1c0] sm:$0xff] %v1430
    %1439 = vst [vmem:[#allocation3 + $0x1c8] sm:$0xff] %v1431
    %1440 = vst [vmem:[#allocation3 + $0x1d0] sm:$0xff] %v1432
    %1441 = vst [vmem:[#allocation3 + $0x1d8] sm:$0xff] %v1433
    %1442 = vst [vmem:[#allocation3 + $0x1e0] sm:$0xff] %v1434
    %1443 = vst [vmem:[#allocation3 + $0x1e8] sm:$0xff] %v1435
    %1444 = vst [vmem:[#allocation3 + $0x1f0] sm:$0xff] %v1436
    %1445 = vst [vmem:[#allocation3 + $0x1f8] sm:$0xff] %v1437
    %1446 = vrot.lane.b32.xlu0 %v1005, 111
    %v1447 = vpop.permute.xlu0 %1446
    %1448 = vrot.lane.b32.xlu0 %v1009, 111
    %v1449 = vpop.permute.xlu0 %1448
    %1450 = vrot.lane.b32.xlu0 %v1006, 111
    %v1451 = vpop.permute.xlu0 %1450
    %1452 = vrot.lane.b32.xlu0 %v1010, 111
    %v1453 = vpop.permute.xlu0 %1452
    %1454 = vrot.lane.b32.xlu0 %v1007, 111
    %v1455 = vpop.permute.xlu0 %1454
    %1456 = vrot.lane.b32.xlu0 %v1011, 111
    %v1457 = vpop.permute.xlu0 %1456
    %1458 = vrot.lane.b32.xlu0 %v1008, 111
    %v1459 = vpop.permute.xlu0 %1458
    %1460 = vrot.lane.b32.xlu0 %v1012, 111
    %v1461 = vpop.permute.xlu0 %1460
    %vm1462 = vcmp.lt.s32.totalorder %v1030, 111
    %v1463 = vsel %vm1462, %v1455, %v1459
    %v1464 = vsel %vm1462, %v1457, %v1461
    %v1465 = vsel %vm1462, %v1451, %v1455
    %v1466 = vsel %vm1462, %v1453, %v1457
    %v1467 = vsel %vm1462, %v1447, %v1451
    %v1468 = vsel %vm1462, %v1449, %v1453
    %v1469 = vsel %vm1462, %v1459, %v1447
    %v1470 = vsel %vm1462, %v1461, %v1449
    %v1471 = vlaneseq
    %v1472 = vshrl.u32 %v1471, 7
    %v1473 = vsub.s32 0, %v1472
    %v1474 = vrot.slane %v44, %v1473
    %v1475 = vlaneseq
    %v1476 = vshrl.u32 %v1475, 7
    %v1477 = vsub.s32 0, %v1476
    %v1478 = vrot.slane %v45, %v1477
    %v1479 = vlaneseq
    %v1480 = vshrl.u32 %v1479, 7
    %v1481 = vsub.s32 0, %v1480
    %v1482 = vrot.slane %v46, %v1481
    %v1483 = vlaneseq
    %v1484 = vshrl.u32 %v1483, 7
    %v1485 = vsub.s32 0, %v1484
    %v1486 = vrot.slane %v47, %v1485
    %v1487 = vmul.f32 %v1467, %v1474
    %v1488 = vmul.f32 %v1465, %v1478
    %v1489 = vmul.f32 %v1463, %v1482
    %v1490 = vmul.f32 %v1469, %v1486
    %v1491 = vmul.f32 %v1468, %v1474
    %v1492 = vmul.f32 %v1466, %v1478
    %v1493 = vmul.f32 %v1464, %v1482
    %v1494 = vmul.f32 %v1470, %v1486
    %1495 = vst [vmem:[#allocation3 + $0x200] sm:$0xff] %v1487
    %1496 = vst [vmem:[#allocation3 + $0x208] sm:$0xff] %v1488
    %1497 = vst [vmem:[#allocation3 + $0x210] sm:$0xff] %v1489
    %1498 = vst [vmem:[#allocation3 + $0x218] sm:$0xff] %v1490
    %1499 = vst [vmem:[#allocation3 + $0x220] sm:$0xff] %v1491
    %1500 = vst [vmem:[#allocation3 + $0x228] sm:$0xff] %v1492
    %1501 = vst [vmem:[#allocation3 + $0x230] sm:$0xff] %v1493
    %1502 = vst [vmem:[#allocation3 + $0x238] sm:$0xff] %v1494
    %v1503 = vld [vmem:[#allocation3] sm:$0xff]
    %v1504 = vld [vmem:[#allocation3 + $0x8] sm:$0xff]
    %v1505 = vld [vmem:[#allocation3 + $0x10] sm:$0xff]
    %v1506 = vld [vmem:[#allocation3 + $0x18] sm:$0xff]
    %v1507 = vld [vmem:[#allocation3 + $0x20] sm:$0xff]
    %v1508 = vld [vmem:[#allocation3 + $0x28] sm:$0xff]
    %v1509 = vld [vmem:[#allocation3 + $0x30] sm:$0xff]
    %v1510 = vld [vmem:[#allocation3 + $0x38] sm:$0xff]
    %v1511 = vld [vmem:[#allocation3 + $0x40] sm:$0xff]
    %v1512 = vld [vmem:[#allocation3 + $0x48] sm:$0xff]
    %v1513 = vld [vmem:[#allocation3 + $0x50] sm:$0xff]
    %v1514 = vld [vmem:[#allocation3 + $0x58] sm:$0xff]
    %v1515 = vld [vmem:[#allocation3 + $0x60] sm:$0xff]
    %v1516 = vld [vmem:[#allocation3 + $0x68] sm:$0xff]
    %v1517 = vld [vmem:[#allocation3 + $0x70] sm:$0xff]
    %v1518 = vld [vmem:[#allocation3 + $0x78] sm:$0xff]
    %v1519 = vld [vmem:[#allocation3 + $0x80] sm:$0xff]
    %v1520 = vld [vmem:[#allocation3 + $0x88] sm:$0xff]
    %v1521 = vld [vmem:[#allocation3 + $0x90] sm:$0xff]
    %v1522 = vld [vmem:[#allocation3 + $0x98] sm:$0xff]
    %v1523 = vld [vmem:[#allocation3 + $0xa0] sm:$0xff]
    %v1524 = vld [vmem:[#allocation3 + $0xa8] sm:$0xff]
    %v1525 = vld [vmem:[#allocation3 + $0xb0] sm:$0xff]
    %v1526 = vld [vmem:[#allocation3 + $0xb8] sm:$0xff]
    %v1527 = vld [vmem:[#allocation3 + $0xc0] sm:$0xff]
    %v1528 = vld [vmem:[#allocation3 + $0xc8] sm:$0xff]
    %v1529 = vld [vmem:[#allocation3 + $0xd0] sm:$0xff]
    %v1530 = vld [vmem:[#allocation3 + $0xd8] sm:$0xff]
    %v1531 = vld [vmem:[#allocation3 + $0xe0] sm:$0xff]
    %v1532 = vld [vmem:[#allocation3 + $0xe8] sm:$0xff]
    %v1533 = vld [vmem:[#allocation3 + $0xf0] sm:$0xff]
    %v1534 = vld [vmem:[#allocation3 + $0xf8] sm:$0xff]
    %v1535 = vld [vmem:[#allocation3 + $0x100] sm:$0xff]
    %v1536 = vld [vmem:[#allocation3 + $0x108] sm:$0xff]
    %v1537 = vld [vmem:[#allocation3 + $0x110] sm:$0xff]
    %v1538 = vld [vmem:[#allocation3 + $0x118] sm:$0xff]
    %v1539 = vld [vmem:[#allocation3 + $0x120] sm:$0xff]
    %v1540 = vld [vmem:[#allocation3 + $0x128] sm:$0xff]
    %v1541 = vld [vmem:[#allocation3 + $0x130] sm:$0xff]
    %v1542 = vld [vmem:[#allocation3 + $0x138] sm:$0xff]
    %v1543 = vld [vmem:[#allocation3 + $0x140] sm:$0xff]
    %v1544 = vld [vmem:[#allocation3 + $0x148] sm:$0xff]
    %v1545 = vld [vmem:[#allocation3 + $0x150] sm:$0xff]
    %v1546 = vld [vmem:[#allocation3 + $0x158] sm:$0xff]
    %v1547 = vld [vmem:[#allocation3 + $0x160] sm:$0xff]
    %v1548 = vld [vmem:[#allocation3 + $0x168] sm:$0xff]
    %v1549 = vld [vmem:[#allocation3 + $0x170] sm:$0xff]
    %v1550 = vld [vmem:[#allocation3 + $0x178] sm:$0xff]
    %v1551 = vld [vmem:[#allocation3 + $0x180] sm:$0xff]
    %v1552 = vld [vmem:[#allocation3 + $0x188] sm:$0xff]
    %v1553 = vld [vmem:[#allocation3 + $0x190] sm:$0xff]
    %v1554 = vld [vmem:[#allocation3 + $0x198] sm:$0xff]
    %v1555 = vld [vmem:[#allocation3 + $0x1a0] sm:$0xff]
    %v1556 = vld [vmem:[#allocation3 + $0x1a8] sm:$0xff]
    %v1557 = vld [vmem:[#allocation3 + $0x1b0] sm:$0xff]
    %v1558 = vld [vmem:[#allocation3 + $0x1b8] sm:$0xff]
    %v1559 = vld [vmem:[#allocation3 + $0x1c0] sm:$0xff]
    %v1560 = vld [vmem:[#allocation3 + $0x1c8] sm:$0xff]
    %v1561 = vld [vmem:[#allocation3 + $0x1d0] sm:$0xff]
    %v1562 = vld [vmem:[#allocation3 + $0x1d8] sm:$0xff]
    %v1563 = vld [vmem:[#allocation3 + $0x1e0] sm:$0xff]
    %v1564 = vld [vmem:[#allocation3 + $0x1e8] sm:$0xff]
    %v1565 = vld [vmem:[#allocation3 + $0x1f0] sm:$0xff]
    %v1566 = vld [vmem:[#allocation3 + $0x1f8] sm:$0xff]
    %v1567 = vld [vmem:[#allocation3 + $0x200] sm:$0xff]
    %v1568 = vld [vmem:[#allocation3 + $0x208] sm:$0xff]
    %v1569 = vld [vmem:[#allocation3 + $0x210] sm:$0xff]
    %v1570 = vld [vmem:[#allocation3 + $0x218] sm:$0xff]
    %v1571 = vld [vmem:[#allocation3 + $0x220] sm:$0xff]
    %v1572 = vld [vmem:[#allocation3 + $0x228] sm:$0xff]
    %v1573 = vld [vmem:[#allocation3 + $0x230] sm:$0xff]
    %v1574 = vld [vmem:[#allocation3 + $0x238] sm:$0xff]
    %v1576 = vcombine.high %v39, %v39
    %vm1577 = vcmask 130048
    %v1578 = vsel %vm1577, %v1576, 0
    %1580 = vmatprep.subr.mxu0 %v1504
    %1581 = vmatpush1.msra.mxu0 %v1503
    %1582 = vmatprep.subr.mxu0 %v1508
    %1583 = vmatpush1.msra.mxu0 %v1507
    %1584 = vmatprep.subr.mxu0 %v1512
    %1585 = vmatpush1.msra.mxu0 %v1511
    %1586 = vmatprep.subr.mxu0 %v1516
    %1587 = vmatpush1.msra.mxu0 %v1515
    %1588 = vmatprep.subr.mxu0 %v1520
    %1589 = vmatpush1.msra.mxu0 %v1519
    %1590 = vmatprep.subr.mxu0 %v1524
    %1591 = vmatpush1.msra.mxu0 %v1523
    %1592 = vmatprep.subr.mxu0 %v1528
    %1593 = vmatpush1.msra.mxu0 %v1527
    %1594 = vmatprep.subr.mxu0 %v1532
    %1595 = vmatpush1.msra.mxu0 %v1531
    %1596 = vmatprep.subr.mxu0 %v1536
    %1597 = vmatpush1.msra.mxu0 %v1535
    %1598 = vmatprep.subr.mxu0 %v1540
    %1599 = vmatpush1.msra.mxu0 %v1539
    %1600 = vmatprep.subr.mxu0 %v1544
    %1601 = vmatpush1.msra.mxu0 %v1543
    %1602 = vmatprep.subr.mxu0 %v1548
    %1603 = vmatpush1.msra.mxu0 %v1547
    %1604 = vmatprep.subr.mxu0 %v1552
    %1605 = vmatpush1.msra.mxu0 %v1551
    %1606 = vmatprep.subr.mxu0 %v1556
    %1607 = vmatpush1.msra.mxu0 %v1555
    %1608 = vmatprep.subr.mxu0 %v1560
    %1609 = vmatpush1.msra.mxu0 %v1559
    %1610 = vmatprep.subr.mxu0 %v1564
    %1611 = vmatpush1.msra.mxu0 %v1563
    %1612 = vmatprep.subr.mxu0 %v1568
    %1613 = vmatpush1.msra.mxu0 %v1567
    %1614 = vmatprep.subr.mxu0 %v1572
    %1615 = vmatpush1.msra.mxu0 %v1571
    %1616 = vmatprep.subr.mxu0 0.0
    %1617 = vmatpush1.msra.mxu0 0.0
    %1618 = vmatprep.subr.mxu0 0.0
    %1619 = vmatpush1.msra.mxu0 0.0
    %1620 = vmatprep.subr.mxu0 0.0
    %1621 = vmatpush1.msra.mxu0 0.0
    %1622 = vmatprep.subr.mxu0 0.0
    %1623 = vmatpush1.msra.mxu0 0.0
    %1624 = vmatprep.subr.mxu0 0.0
    %1625 = vmatpush1.msra.mxu0 0.0
    %1626 = vmatprep.subr.mxu0 0.0
    %1627 = vmatpush1.msra.mxu0 0.0
    %1628 = vmatprep.subr.mxu0 0.0
    %1629 = vmatpush1.msra.mxu0 0.0
    %1630 = vmatprep.subr.mxu0 0.0
    %1631 = vmatpush1.msra.mxu0 0.0
    %1632 = vmatprep.subr.mxu0 0.0
    %1633 = vmatpush1.msra.mxu0 0.0
    %1634 = vmatprep.subr.mxu0 0.0
    %1635 = vmatpush1.msra.mxu0 0.0
    %1636 = vmatprep.subr.mxu0 0.0
    %1637 = vmatpush1.msra.mxu0 0.0
    %1638 = vmatprep.subr.mxu0 0.0
    %1639 = vmatpush1.msra.mxu0 0.0
    %1640 = vmatprep.subr.mxu0 0.0
    %1641 = vmatpush1.msra.mxu0 0.0
    %1642 = vmatprep.subr.mxu0 0.0
    %1643 = vmatpush1.msra.mxu0 0.0
    %1644 = vmatprep.mubr.f32.mxu0 %v1578
    %1645 = vmatmul.mubr.f32.gmra.mrb[0].mxu0 %v39
    %v1646 = vpop.f32.mrb[0].mxu0
    %v1647 = vadd.f32 0.0, %v1646
    %v1648 = vpop.f32.mrb[0].mxu0
    %v1649 = vadd.f32 0.0, %v1648
    %1650 = vdwg.mxu0
    %1651 = vmatprep.subr.mxu0 %v1506
    %1652 = vmatpush1.msra.mxu0 %v1505
    %1653 = vmatprep.subr.mxu0 %v1510
    %1654 = vmatpush1.msra.mxu0 %v1509
    %1655 = vmatprep.subr.mxu0 %v1514
    %1656 = vmatpush1.msra.mxu0 %v1513
    %1657 = vmatprep.subr.mxu0 %v1518
    %1658 = vmatpush1.msra.mxu0 %v1517
    %1659 = vmatprep.subr.mxu0 %v1522
    %1660 = vmatpush1.msra.mxu0 %v1521
    %1661 = vmatprep.subr.mxu0 %v1526
    %1662 = vmatpush1.msra.mxu0 %v1525
    %1663 = vmatprep.subr.mxu0 %v1530
    %1664 = vmatpush1.msra.mxu0 %v1529
    %1665 = vmatprep.subr.mxu0 %v1534
    %1666 = vmatpush1.msra.mxu0 %v1533
    %1667 = vmatprep.subr.mxu0 %v1538
    %1668 = vmatpush1.msra.mxu0 %v1537
    %1669 = vmatprep.subr.mxu0 %v1542
    %1670 = vmatpush1.msra.mxu0 %v1541
    %1671 = vmatprep.subr.mxu0 %v1546
    %1672 = vmatpush1.msra.mxu0 %v1545
    %1673 = vmatprep.subr.mxu0 %v1550
    %1674 = vmatpush1.msra.mxu0 %v1549
    %1675 = vmatprep.subr.mxu0 %v1554
    %1676 = vmatpush1.msra.mxu0 %v1553
    %1677 = vmatprep.subr.mxu0 %v1558
    %1678 = vmatpush1.msra.mxu0 %v1557
    %1679 = vmatprep.subr.mxu0 %v1562
    %1680 = vmatpush1.msra.mxu0 %v1561
    %1681 = vmatprep.subr.mxu0 %v1566
    %1682 = vmatpush1.msra.mxu0 %v1565
    %1683 = vmatprep.subr.mxu0 %v1570
    %1684 = vmatpush1.msra.mxu0 %v1569
    %1685 = vmatprep.subr.mxu0 %v1574
    %1686 = vmatpush1.msra.mxu0 %v1573
    %1687 = vmatprep.subr.mxu0 0.0
    %1688 = vmatpush1.msra.mxu0 0.0
    %1689 = vmatprep.subr.mxu0 0.0
    %1690 = vmatpush1.msra.mxu0 0.0
    %1691 = vmatprep.subr.mxu0 0.0
    %1692 = vmatpush1.msra.mxu0 0.0
    %1693 = vmatprep.subr.mxu0 0.0
    %1694 = vmatpush1.msra.mxu0 0.0
    %1695 = vmatprep.subr.mxu0 0.0
    %1696 = vmatpush1.msra.mxu0 0.0
    %1697 = vmatprep.subr.mxu0 0.0
    %1698 = vmatpush1.msra.mxu0 0.0
    %1699 = vmatprep.subr.mxu0 0.0
    %1700 = vmatpush1.msra.mxu0 0.0
    %1701 = vmatprep.subr.mxu0 0.0
    %1702 = vmatpush1.msra.mxu0 0.0
    %1703 = vmatprep.subr.mxu0 0.0
    %1704 = vmatpush1.msra.mxu0 0.0
    %1705 = vmatprep.subr.mxu0 0.0
    %1706 = vmatpush1.msra.mxu0 0.0
    %1707 = vmatprep.subr.mxu0 0.0
    %1708 = vmatpush1.msra.mxu0 0.0
    %1709 = vmatprep.subr.mxu0 0.0
    %1710 = vmatpush1.msra.mxu0 0.0
    %1711 = vmatprep.subr.mxu0 0.0
    %1712 = vmatpush1.msra.mxu0 0.0
    %1713 = vmatprep.subr.mxu0 0.0
    %1714 = vmatpush1.msra.mxu0 0.0
    %1715 = vmatprep.mubr.f32.mxu0 %v1578
    %1716 = vmatmul.mubr.f32.gmra.mrb[0].mxu0 %v39
    %v1717 = vpop.f32.mrb[0].mxu0
    %v1718 = vadd.f32 0.0, %v1717
    %v1719 = vpop.f32.mrb[0].mxu0
    %v1720 = vadd.f32 0.0, %v1719
    %1721 = vdwg.mxu0
    %v1724 = vrot.slane %v1647, 4
    %v1725 = vrot.slane %v1649, 4
    %v1728 = vsel %vm54, %v35, %v1724
    %v1729 = vsel %vm54, %v50, %v1725
    %1730 = vst [vmem:[#allocation7] sm:$0xff] %v1728
    %1731 = vst [vmem:[#allocation7 + $0x8] sm:$0xff] %v1729
    %v1734 = vrot.slane %v1718, 4
    %v1735 = vrot.slane %v1720, 4
    %v1738 = vsel %vm54, %v36, %v1734
    %v1739 = vsel %vm54, %v51, %v1735
    %s1740 = scalar_lea.vmem [#allocation7], 16
    %1741 = vst [vmem:[%s1740] sm:$0xff] %v1738
    %1742 = vst [vmem:[%s1740 + $0x8] sm:$0xff] %v1739
    // Predicated region
    $region26: #{tpu_custom_call.1} parent=1 // pred_check
      _
    $region27: #{tpu_custom_call.1} parent=1 // pred_check_branch
      %1744 = sbr.rel (0) target = $region29
    $region28: #{tpu_custom_call.1} parent=1 // pred_region
      %s1746 = ssub.s32 512, 512
      %1747 = vsyncadd [#allocation6], %s1746
      %s1748 = sshll.u32 [#allocation7], 4
      %s1749 = int_to_ptr.vmem [resolvable:$true] %s1748
      %1754 = dma.vmem_to_hbm [thread:$0]  %s1749, 512, %s5, [#allocation6], 256, 256, 16
    $region29: #{tpu_custom_call.1} parent=1 // pred_fallthru
      _
    // Predicated region
    $region30: #{tpu_custom_call.1} parent=1 // pred_check
      _
    $region31: #{tpu_custom_call.1} parent=1 // pred_check_branch
      %1756 = sbr.rel (0) target = $region33
    $region32: #{tpu_custom_call.1} parent=1 // pred_region
      %1757 = dma.done [#allocation6], 512
    $region33: #{tpu_custom_call.1} parent=1 // pred_fallthru
      _
    %1758 = vsyncpa [#allocation5], 1
    %1759 = vsyncpa [#allocation6], 1

</llo_original>
